<compile_context>
chip_gen: v7x
topology: tpu7x:2x2x1
jax: 0.10.0
libtpu: 0.0.40
codegen_flags: <defaults>
</compile_context>

<pallas_src>
import functools
import math

import jax
import jax.numpy as jnp
from jax.experimental import pallas as pl
from jax.experimental.pallas import tpu as pltpu


_HID = 512      # hidden width of the MLP
_EPS = 1e-5     # BatchNorm1d eps
_SLOPE = 0.2    # LeakyReLU negative slope


def _decoder_kernel(b_real, z_ref, w1_ref, b1_ref, w2_ref, b2_ref,
                    gamma_ref, beta_ref, w3_ref, b3_ref, out_ref, h2n_ref):
    """One grid step.

    On the first tile of each chunk (program_id(1) == 0) the full-batch
    prologue (Linear1 + LeakyReLU + Linear2 + BatchNorm + LeakyReLU) is
    computed into the persistent VMEM scratch `h2n_ref` (bf16).  Every step
    then computes one (Bp, 512) @ (512, TN) slab of the third Linear + Tanh.
    """

    @pl.when(pl.program_id(1) == 0)
    def _prologue():
        # ---- Linear 1 + LeakyReLU(0.2) (bf16 inputs, f32 accumulation) ----
        z = z_ref[...].astype(jnp.bfloat16)
        h1 = jnp.dot(z, w1_ref[...], preferred_element_type=jnp.float32)
        h1 = h1 + b1_ref[...]
        h1 = jnp.maximum(h1, _SLOPE * h1)

        # ---- Linear 2 ----
        h2 = jnp.dot(h1.astype(jnp.bfloat16), w2_ref[...],
                     preferred_element_type=jnp.float32)
        h2 = h2 + b2_ref[...]

        # ---- BatchNorm1d (training mode: biased batch stats over the REAL
        #      rows only; padded rows masked out), folded to scale/shift.
        #      One-pass variance: E[x^2] - mean^2. ----
        bp = h2.shape[0]
        inv_n = 1.0 / float(b_real)
        if b_real < bp:  # static (trace-time) branch
            row = jax.lax.broadcasted_iota(jnp.int32, (bp, _HID), 0)
            valid = (row < b_real).astype(jnp.float32)
            h2v = h2 * valid
            mean = jnp.sum(h2v, axis=0, keepdims=True) * inv_n
            ex2 = jnp.sum(h2v * h2, axis=0, keepdims=True) * inv_n
        else:
            mean = jnp.sum(h2, axis=0, keepdims=True) * inv_n
            ex2 = jnp.sum(h2 * h2, axis=0, keepdims=True) * inv_n
        var = ex2 - mean * mean
        scale = gamma_ref[...] * jax.lax.rsqrt(var + _EPS)
        shift = beta_ref[...] - mean * scale
        h2n = h2 * scale + shift

        # ---- LeakyReLU(0.2) ----
        h2n = jnp.maximum(h2n, _SLOPE * h2n)
        h2n_ref[...] = h2n.astype(jnp.bfloat16)

    # ---- Linear 3 (streamed over output-feature tiles) + Tanh ----
    h3 = jnp.dot(h2n_ref[...], w3_ref[...], preferred_element_type=jnp.float32)
    out_ref[...] = jnp.tanh(h3 + b3_ref[...])


def _round_up(x, m):
    return (x + m - 1) // m * m


@functools.partial(jax.jit, static_argnames=("img_shape", "tile_n"))
def decoder_forward(z, params, img_shape, tile_n=None):
    """z: (B, latent_dim) float32 -> img: (B, *img_shape) float32."""
    w1, b1, w2, b2, gamma, beta, w3, b3 = params
    B, latent = z.shape
    out_dim = w3.shape[1]

    # --- pad batch (sublanes / MXU rows) and output features (lanes) ---
    bp = _round_up(max(B, 1), 16)
    out_pad = _round_up(out_dim, 128)
    if bp != B:
        z = jnp.pad(z, ((0, bp - B), (0, 0)))
    if out_pad != out_dim:
        w3 = jnp.pad(w3, ((0, 0), (0, out_pad - out_dim)))
        b3 = jnp.pad(b3, ((0, 0), (0, out_pad - out_dim)))

    # --- choose output-feature tile and grid ---
    if tile_n is None:
        tile_n = next(t for t in (512, 256, 128) if out_pad % t == 0)
    assert out_pad % tile_n == 0, (out_pad, tile_n)
    num_tiles = out_pad // tile_n
    n_chunks = 2 if num_tiles % 2 == 0 else 1       # "parallel" axis (v7x megacore)
    tiles_per_chunk = num_tiles // n_chunks

    def _resident(shape):
        # Same block every step -> fetched once, stays VMEM-resident.
        return pl.BlockSpec(shape, lambda c, t: (0, 0))

    def _streamed(block):
        return pl.BlockSpec(block, lambda c, t: (0, c * tiles_per_chunk + t))

    grid_spec = pltpu.PrefetchScalarGridSpec(
        num_scalar_prefetch=0,
        grid=(n_chunks, tiles_per_chunk),
        in_specs=[
            _resident((bp, latent)),                  # z
            _resident(w1.shape), _resident(b1.shape),
            _resident(w2.shape), _resident(b2.shape),
            _resident(gamma.shape), _resident(beta.shape),
            _streamed((_HID, tile_n)),                # w3 tile (dominant stream)
            _streamed((1, tile_n)),                   # b3 tile
        ],
        out_specs=_streamed((bp, tile_n)),
        scratch_shapes=[pltpu.VMEM((bp, _HID), jnp.bfloat16)],  # persistent h2n
    )

    # --- VMEM budget: actual footprint + headroom, capped for v7x (64 MiB) ---
    streamed_bytes = 2 * (_HID * tile_n * 2 + bp * tile_n * 4 + 8 * tile_n * 4)
    resident_bytes = 2 * (bp * latent * 4 + latent * _HID * 2
                          + _HID * _HID * 2 + 4 * 8 * _HID * 4)
    scratch_bytes = bp * _HID * 2
    vmem_limit = min(48 << 20,
                     max(16 << 20,
                         2 * (streamed_bytes + resident_bytes + scratch_bytes)))

    def _nbytes(a):
        return a.size * a.dtype.itemsize

    cost = pl.CostEstimate(
        flops=2 * bp * (latent * _HID + _HID * _HID + _HID * out_pad),
        transcendentals=bp * out_pad,                 # tanh
        bytes_accessed=sum(_nbytes(a) for a in
                           (z, w1, b1, w2, b2, gamma, beta, w3, b3))
                       + bp * out_pad * 4,
    )

    img_flat = pl.pallas_call(
        functools.partial(_decoder_kernel, B),
        out_shape=jax.ShapeDtypeStruct((bp, out_pad), jnp.float32),
        grid_spec=grid_spec,
        compiler_params=pltpu.CompilerParams(
            dimension_semantics=("parallel", "arbitrary"),
            vmem_limit_bytes=int(vmem_limit),
        ),
        cost_estimate=cost,
    )(z, w1, b1, w2, b2, gamma, beta, w3, b3)

    # Strip padding; PyTorch: img_flat.view(B, *img_shape)  (NCHW)
    return img_flat[:B, :out_dim].reshape((B,) + img_shape)


def init_params(key, latent_dim, img_shape):
    """Synthetic parameters matching the PyTorch module's shapes/init.

    Weights are stored transposed to (in_features, out_features) and in
    bfloat16 (the kernel accumulates in f32 on the MXU); biases and BN
    parameters stay float32.
    """
    out_dim = math.prod(img_shape)
    k1, k2, k3, k4, k5, k6 = jax.random.split(key, 6)

    def lin(kw, kb, fan_in, fan_out):
        bound = 1.0 / math.sqrt(fan_in)
        w = jax.random.uniform(kw, (fan_in, fan_out), jnp.float32, -bound, bound)
        b = jax.random.uniform(kb, (1, fan_out), jnp.float32, -bound, bound)
        return w.astype(jnp.bfloat16), b

    w1, b1 = lin(k1, k2, latent_dim, _HID)
    w2, b2 = lin(k3, k4, _HID, _HID)
    w3, b3 = lin(k5, k6, _HID, out_dim)
    gamma = jnp.ones((1, _HID), jnp.float32)    # BatchNorm1d weight init
    beta = jnp.zeros((1, _HID), jnp.float32)    # BatchNorm1d bias init
    return (w1, b1, w2, b2, gamma, beta, w3, b3)


@functools.partial(jax.jit, static_argnames=("img_shape",))
def decoder_reference(z, params, img_shape):
    """Pure-JAX reference of the same math (same bf16 weight precision)."""
    w1, b1, w2, b2, gamma, beta, w3, b3 = params
    bf = jnp.bfloat16
    h1 = jnp.dot(z.astype(bf), w1, preferred_element_type=jnp.float32) + b1
    h1 = jnp.maximum(h1, _SLOPE * h1)
    h2 = jnp.dot(h1.astype(bf), w2, preferred_element_type=jnp.float32) + b2
    mean = jnp.mean(h2, axis=0, keepdims=True)
    var = jnp.mean(h2 * h2, axis=0, keepdims=True) - mean * mean
    h2n = (h2 - mean) * jax.lax.rsqrt(var + _EPS) * gamma + beta
    h2n = jnp.maximum(h2n, _SLOPE * h2n)
    h3 = jnp.dot(h2n.astype(bf), w3, preferred_element_type=jnp.float32) + b3
    return jnp.tanh(h3).reshape((z.shape[0],) + img_shape)


if __name__ == "__main__":
    latent_dim = 16
    img_shape = (1, 32, 32)     # (C, H, W) -> 1024 output features
    batch = 4                   # padded to 16 inside the wrapper

    key = jax.random.PRNGKey(0)
    kz, kp = jax.random.split(key)
    z = jax.random.normal(kz, (batch, latent_dim), jnp.float32)
    params = init_params(kp, latent_dim, img_shape)

    img = decoder_forward(z, params, img_shape, tile_n=256)   # grid (2, 2)
    jax.block_until_ready(img)
    ref = decoder_reference(z, params, img_shape)
    assert img.shape == (batch,) + img_shape
    assert jnp.allclose(img, ref, atol=2e-3, rtol=2e-3), \
        float(jnp.max(jnp.abs(img - ref)))

    # Second config: non-multiple-of-128 output (1x28x28 = 784) exercises the
    # lane-padding path and an odd tile count -> grid (1, 7) with scratch
    # reuse across the "arbitrary" axis; batch 5 exercises masked BN stats.
    img_shape2 = (1, 28, 28)
    z2 = jax.random.normal(jax.random.PRNGKey(1), (5, latent_dim), jnp.float32)
    params2 = init_params(jax.random.PRNGKey(2), latent_dim, img_shape2)
    img2 = decoder_forward(z2, params2, img_shape2)
    jax.block_until_ready(img2)
    ref2 = decoder_reference(z2, params2, img_shape2)
    assert img2.shape == (5,) + img_shape2
    assert jnp.allclose(img2, ref2, atol=2e-3, rtol=2e-3), \
        float(jnp.max(jnp.abs(img2 - ref2)))

    print("KERNEL_OK")
</pallas_src>

<mosaic_0001>
module attributes {stable_mosaic.version = 11 : i64} {
  func.func @_decoder_kernel(%arg0: i32, %arg1: i32, %arg2: memref<16x16xf32, #tpu.memory_space<vmem>>, %arg3: memref<16x512xbf16, #tpu.memory_space<vmem>>, %arg4: memref<1x512xf32, #tpu.memory_space<vmem>>, %arg5: memref<512x512xbf16, #tpu.memory_space<vmem>>, %arg6: memref<1x512xf32, #tpu.memory_space<vmem>>, %arg7: memref<1x512xf32, #tpu.memory_space<vmem>>, %arg8: memref<1x512xf32, #tpu.memory_space<vmem>>, %arg9: memref<512x256xbf16, #tpu.memory_space<vmem>>, %arg10: memref<1x256xf32, #tpu.memory_space<vmem>>, %arg11: memref<16x256xf32, #tpu.memory_space<vmem>>, %arg12: memref<16x512xbf16, #tpu.memory_space<vmem>>) attributes {dimension_semantics = [#tpu.dimension_semantics<parallel>, #tpu.dimension_semantics<arbitrary>], iteration_bounds = array<i64: 2, 2>, scalar_prefetch = 0 : i64, scratch_operands = 1 : i64, tpu.core_type = #tpu.core_type<tc>, window_params = [{pipeline_mode = #tpu.pipeline_mode<synchronous>, transform_indices = @transform_0, window_bounds = array<i64: 16, 16>}, {pipeline_mode = #tpu.pipeline_mode<synchronous>, transform_indices = @transform_1, window_bounds = array<i64: 16, 512>}, {pipeline_mode = #tpu.pipeline_mode<synchronous>, transform_indices = @transform_2, window_bounds = array<i64: 1, 512>}, {pipeline_mode = #tpu.pipeline_mode<synchronous>, transform_indices = @transform_3, window_bounds = array<i64: 512, 512>}, {pipeline_mode = #tpu.pipeline_mode<synchronous>, transform_indices = @transform_4, window_bounds = array<i64: 1, 512>}, {pipeline_mode = #tpu.pipeline_mode<synchronous>, transform_indices = @transform_5, window_bounds = array<i64: 1, 512>}, {pipeline_mode = #tpu.pipeline_mode<synchronous>, transform_indices = @transform_6, window_bounds = array<i64: 1, 512>}, {transform_indices = @transform_7, window_bounds = array<i64: 512, 256>}, {transform_indices = @transform_8, window_bounds = array<i64: 1, 256>}, {transform_indices = @transform_9, window_bounds = array<i64: 16, 256>}]} {
    %c0_i32 = arith.constant 0 : i32
    %0 = arith.cmpi eq, %arg1, %c0_i32 : i32
    %1 = arith.extui %0 : i1 to i32
    %c0_i32_0 = arith.constant 0 : i32
    %2 = arith.cmpi ne, %1, %c0_i32_0 : i32
    scf.if %2 {
      %c0_8 = arith.constant 0 : index
      %c0_9 = arith.constant 0 : index
      %11 = vector.load %arg2[%c0_8, %c0_9] : memref<16x16xf32, #tpu.memory_space<vmem>>, vector<16x16xf32>
      %12 = arith.truncf %11 : vector<16x16xf32> to vector<16x16xbf16>
      %c0_10 = arith.constant 0 : index
      %c0_11 = arith.constant 0 : index
      %13 = vector.load %arg3[%c0_10, %c0_11] : memref<16x512xbf16, #tpu.memory_space<vmem>>, vector<16x512xbf16>
      %cst_12 = arith.constant dense<0.000000e+00> : vector<16x512xf32>
      %14 = tpu.matmul %12, %13, %cst_12 {dimension_numbers = #tpu.dot_dimension_numbers<[1], [0], [0], [1], [0, 0, 1, 1], [], []>} : vector<16x16xbf16>, vector<16x512xbf16>, vector<16x512xf32> -> vector<16x512xf32>
      %c0_13 = arith.constant 0 : index
      %c0_14 = arith.constant 0 : index
      %15 = vector.load %arg4[%c0_13, %c0_14] : memref<1x512xf32, #tpu.memory_space<vmem>>, vector<1x512xf32>
      %16 = vector.broadcast %15 : vector<1x512xf32> to vector<16x512xf32>
      %17 = arith.addf %14, %16 : vector<16x512xf32>
      %cst_15 = arith.constant 2.000000e-01 : f32
      %18 = vector.broadcast %cst_15 : f32 to vector<16x512xf32>
      %19 = arith.mulf %18, %17 : vector<16x512xf32>
      %20 = arith.maximumf %17, %19 : vector<16x512xf32>
      %21 = arith.truncf %20 : vector<16x512xf32> to vector<16x512xbf16>
      %c0_16 = arith.constant 0 : index
      %c0_17 = arith.constant 0 : index
      %22 = vector.load %arg5[%c0_16, %c0_17] : memref<512x512xbf16, #tpu.memory_space<vmem>>, vector<512x512xbf16>
      %cst_18 = arith.constant dense<0.000000e+00> : vector<16x512xf32>
      %23 = tpu.matmul %21, %22, %cst_18 {dimension_numbers = #tpu.dot_dimension_numbers<[1], [0], [0], [1], [0, 0, 1, 1], [], []>} : vector<16x512xbf16>, vector<512x512xbf16>, vector<16x512xf32> -> vector<16x512xf32>
      %c0_19 = arith.constant 0 : index
      %c0_20 = arith.constant 0 : index
      %24 = vector.load %arg6[%c0_19, %c0_20] : memref<1x512xf32, #tpu.memory_space<vmem>>, vector<1x512xf32>
      %25 = vector.broadcast %24 : vector<1x512xf32> to vector<16x512xf32>
      %26 = arith.addf %23, %25 : vector<16x512xf32>
      %27 = tpu.iota {dimensions = array<i32: 0>} : vector<16x512xi32>
      %c4_i32 = arith.constant 4 : i32
      %28 = vector.broadcast %c4_i32 : i32 to vector<16x512xi32>
      %29 = arith.cmpi slt, %27, %28 : vector<16x512xi32>
      %30 = arith.extui %29 : vector<16x512xi1> to vector<16x512xi32>
      %31 = arith.sitofp %30 : vector<16x512xi32> to vector<16x512xf32>
      %32 = arith.mulf %26, %31 : vector<16x512xf32>
      %cst_21 = arith.constant dense<0.000000e+00> : vector<512xf32>
      %33 = vector.multi_reduction <add>, %32, %cst_21 [0] : vector<16x512xf32> to vector<512xf32>
      %34 = vector.shape_cast %33 : vector<512xf32> to vector<1x512xf32>
      %cst_22 = arith.constant 2.500000e-01 : f32
      %35 = vector.broadcast %cst_22 : f32 to vector<1x512xf32>
      %36 = arith.mulf %34, %35 : vector<1x512xf32>
      %37 = arith.mulf %32, %26 : vector<16x512xf32>
      %cst_23 = arith.constant dense<0.000000e+00> : vector<512xf32>
      %38 = vector.multi_reduction <add>, %37, %cst_23 [0] : vector<16x512xf32> to vector<512xf32>
      %39 = vector.shape_cast %38 : vector<512xf32> to vector<1x512xf32>
      %cst_24 = arith.constant 2.500000e-01 : f32
      %40 = vector.broadcast %cst_24 : f32 to vector<1x512xf32>
      %41 = arith.mulf %39, %40 : vector<1x512xf32>
      %42 = arith.mulf %36, %36 : vector<1x512xf32>
      %43 = arith.subf %41, %42 : vector<1x512xf32>
      %c0_25 = arith.constant 0 : index
      %c0_26 = arith.constant 0 : index
      %44 = vector.load %arg7[%c0_25, %c0_26] : memref<1x512xf32, #tpu.memory_space<vmem>>, vector<1x512xf32>
      %cst_27 = arith.constant 9.99999974E-6 : f32
      %45 = vector.broadcast %cst_27 : f32 to vector<1x512xf32>
      %46 = arith.addf %43, %45 : vector<1x512xf32>
      %47 = math.rsqrt %46 : vector<1x512xf32>
      %48 = arith.mulf %44, %47 : vector<1x512xf32>
      %c0_28 = arith.constant 0 : index
      %c0_29 = arith.constant 0 : index
      %49 = vector.load %arg8[%c0_28, %c0_29] : memref<1x512xf32, #tpu.memory_space<vmem>>, vector<1x512xf32>
      %50 = arith.mulf %36, %48 : vector<1x512xf32>
      %51 = arith.subf %49, %50 : vector<1x512xf32>
      %52 = vector.broadcast %48 : vector<1x512xf32> to vector<16x512xf32>
      %53 = arith.mulf %26, %52 : vector<16x512xf32>
      %54 = vector.broadcast %51 : vector<1x512xf32> to vector<16x512xf32>
      %55 = arith.addf %53, %54 : vector<16x512xf32>
      %cst_30 = arith.constant 2.000000e-01 : f32
      %56 = vector.broadcast %cst_30 : f32 to vector<16x512xf32>
      %57 = arith.mulf %56, %55 : vector<16x512xf32>
      %58 = arith.maximumf %55, %57 : vector<16x512xf32>
      %59 = arith.truncf %58 : vector<16x512xf32> to vector<16x512xbf16>
      %c0_31 = arith.constant 0 : index
      %c0_32 = arith.constant 0 : index
      %60 = vector.load %arg12[%c0_31, %c0_32] : memref<16x512xbf16, #tpu.memory_space<vmem>>, vector<16x512xbf16>
      tpu.vector_store %arg12[%c0_31, %c0_32], %59 {strides = array<i32>} : memref<16x512xbf16, #tpu.memory_space<vmem>>, vector<16x512xbf16>,
    } else {
    }
    %c0 = arith.constant 0 : index
    %c0_1 = arith.constant 0 : index
    %3 = vector.load %arg12[%c0, %c0_1] : memref<16x512xbf16, #tpu.memory_space<vmem>>, vector<16x512xbf16>
    %c0_2 = arith.constant 0 : index
    %c0_3 = arith.constant 0 : index
    %4 = vector.load %arg9[%c0_2, %c0_3] : memref<512x256xbf16, #tpu.memory_space<vmem>>, vector<512x256xbf16>
    %cst = arith.constant dense<0.000000e+00> : vector<16x256xf32>
    %5 = tpu.matmul %3, %4, %cst {dimension_numbers = #tpu.dot_dimension_numbers<[1], [0], [0], [1], [0, 0, 1, 1], [], []>} : vector<16x512xbf16>, vector<512x256xbf16>, vector<16x256xf32> -> vector<16x256xf32>
    %c0_4 = arith.constant 0 : index
    %c0_5 = arith.constant 0 : index
    %6 = vector.load %arg10[%c0_4, %c0_5] : memref<1x256xf32, #tpu.memory_space<vmem>>, vector<1x256xf32>
    %7 = vector.broadcast %6 : vector<1x256xf32> to vector<16x256xf32>
    %8 = arith.addf %5, %7 : vector<16x256xf32>
    %9 = math.tanh %8 : vector<16x256xf32>
    %c0_6 = arith.constant 0 : index
    %c0_7 = arith.constant 0 : index
    %10 = vector.load %arg11[%c0_6, %c0_7] : memref<16x256xf32, #tpu.memory_space<vmem>>, vector<16x256xf32>
    tpu.vector_store %arg11[%c0_6, %c0_7], %9 {strides = array<i32>} : memref<16x256xf32, #tpu.memory_space<vmem>>, vector<16x256xf32>,
    return
  }
  func.func @transform_0(%arg0: i32, %arg1: i32) -> (i32, i32) {
    %c0_i32 = arith.constant 0 : i32
    %c0_i32_0 = arith.constant 0 : i32
    %c0_i32_1 = arith.constant 0 : i32
    return %c0_i32, %c0_i32_0 : i32, i32
  }
  func.func @transform_1(%arg0: i32, %arg1: i32) -> (i32, i32) {
    %c0_i32 = arith.constant 0 : i32
    %c0_i32_0 = arith.constant 0 : i32
    %c0_i32_1 = arith.constant 0 : i32
    return %c0_i32, %c0_i32_0 : i32, i32
  }
  func.func @transform_2(%arg0: i32, %arg1: i32) -> (i32, i32) {
    %c0_i32 = arith.constant 0 : i32
    %c0_i32_0 = arith.constant 0 : i32
    %c0_i32_1 = arith.constant 0 : i32
    return %c0_i32, %c0_i32_0 : i32, i32
  }
  func.func @transform_3(%arg0: i32, %arg1: i32) -> (i32, i32) {
    %c0_i32 = arith.constant 0 : i32
    %c0_i32_0 = arith.constant 0 : i32
    %c0_i32_1 = arith.constant 0 : i32
    return %c0_i32, %c0_i32_0 : i32, i32
  }
  func.func @transform_4(%arg0: i32, %arg1: i32) -> (i32, i32) {
    %c0_i32 = arith.constant 0 : i32
    %c0_i32_0 = arith.constant 0 : i32
    %c0_i32_1 = arith.constant 0 : i32
    return %c0_i32, %c0_i32_0 : i32, i32
  }
  func.func @transform_5(%arg0: i32, %arg1: i32) -> (i32, i32) {
    %c0_i32 = arith.constant 0 : i32
    %c0_i32_0 = arith.constant 0 : i32
    %c0_i32_1 = arith.constant 0 : i32
    return %c0_i32, %c0_i32_0 : i32, i32
  }
  func.func @transform_6(%arg0: i32, %arg1: i32) -> (i32, i32) {
    %c0_i32 = arith.constant 0 : i32
    %c0_i32_0 = arith.constant 0 : i32
    %c0_i32_1 = arith.constant 0 : i32
    return %c0_i32, %c0_i32_0 : i32, i32
  }
  func.func @transform_7(%arg0: i32, %arg1: i32) -> (i32, i32) {
    %c2_i32 = arith.constant 2 : i32
    %0 = arith.muli %arg0, %c2_i32 : i32
    %1 = arith.addi %0, %arg1 : i32
    %c0_i32 = arith.constant 0 : i32
    %c0_i32_0 = arith.constant 0 : i32
    return %c0_i32, %1 : i32, i32
  }
  func.func @transform_8(%arg0: i32, %arg1: i32) -> (i32, i32) {
    %c2_i32 = arith.constant 2 : i32
    %0 = arith.muli %arg0, %c2_i32 : i32
    %1 = arith.addi %0, %arg1 : i32
    %c0_i32 = arith.constant 0 : i32
    %c0_i32_0 = arith.constant 0 : i32
    return %c0_i32, %1 : i32, i32
  }
  func.func @transform_9(%arg0: i32, %arg1: i32) -> (i32, i32) {
    %c2_i32 = arith.constant 2 : i32
    %0 = arith.muli %arg0, %c2_i32 : i32
    %1 = arith.addi %0, %arg1 : i32
    %c0_i32 = arith.constant 0 : i32
    %c0_i32_0 = arith.constant 0 : i32
    return %c0_i32, %1 : i32, i32
  }
}

</mosaic_0001>

<llo_original>
// kernel: decoder_forward.1
$region0: #{decoder_forward.1}
  #allocation0 [shape = 'u32[]', space=smem, size = 0x4, offset = 0x4, fixed_abs, tag = 'smem constant byte address 0x4 - core index']
  #allocation1 [shape = 'u32[144,128]{1,0:T(1,128)}', space=vmem, size = 0x12000, scoped, tag = 'internal scratch']
  #allocation2 [shape = 'bf16[16,512]{1,0:T(16,128)(2,1)}', space=vmem, size = 0x4000, scoped, tag = 'scratch operand']
  %s0 = inlined_call_operand.vmem [shape: f32[16,16], index: 0, kind: input, shape index: {}]
  %s1 = inlined_call_operand.hbm [shape: bf16[16,512], index: 1, kind: input, shape index: {}]
  %s2 = inlined_call_operand.vmem [shape: f32[1,512], index: 2, kind: input, shape index: {}]
  %s3 = inlined_call_operand.hbm [shape: bf16[512,512], index: 3, kind: input, shape index: {}]
  %s4 = inlined_call_operand.vmem [shape: f32[1,512], index: 4, kind: input, shape index: {}]
  %s5 = inlined_call_operand.vmem [shape: f32[1,512], index: 5, kind: input, shape index: {}]
  %s6 = inlined_call_operand.vmem [shape: f32[1,512], index: 6, kind: input, shape index: {}]
  %s7 = inlined_call_operand.hbm [shape: bf16[512,1024], index: 7, kind: input, shape index: {}]
  %s8 = inlined_call_operand.vmem [shape: f32[1,1024], index: 8, kind: input, shape index: {}]
  %s9 = inlined_call_operand.vmem [shape: f32[16,1024], index: 9, kind: output, shape index: {}]
  %s10 = sld [smem:[#allocation0]]
  $region104: #{decoder_forward.1} parent=0
    _
  %s12 = ssub.s32 1, %s10
  %s13 = scalar_select 0, %s12, %s10
  $region1: #{decoder_forward.1} parent=0
    #allocation3 [shape = 'u8[16384]{0}', space=vmem, size = 0x4000, scoped, tag = 'input window, operand 1, single buffered']
    #allocation4 [shape = 's32[2]{0}', space=sflag, size = 0x8, scoped, tag = 'scoped memory for decoder_forward.1']
    #allocation5 [shape = 'u8[524288]{0}', space=vmem, size = 0x80000, scoped, tag = 'input window, operand 3, single buffered']
    #allocation6 [shape = 's32[1]{0}', space=sflag, size = 0x4, scoped, tag = 'scoped memory for decoder_forward.1']
    #allocation7 [shape = 'u8[524288]{0}', space=vmem, size = 0x80000, scoped, tag = 'input window, operand 7']
    #allocation8 [shape = 'u8[32768]{0}', space=vmem, size = 0x8000, scoped, tag = 'output window, operand 0']
    %14 = vsyncpa [#allocation4], 0
    %15 = vsyncpa [#allocation6], 0
    loop: start=0, step=1, limit=6
    $region2: #{decoder_forward.1} parent=1 // loop_pre_header
      _
    $region3: #{decoder_forward.1} parent=1 // loop_header
      %s17 = sphi 0, %s21
      %p18 = scmp.ge.s32.totalorder %s17, 6
      %s24 = sphi 0, %s36
      %s25 = sphi 0, %s32
      %s26 = sphi 0, %s24
      %s27 = sphi 0, %s25
      %s28 = sphi 0, %s26
      %s29 = sphi 0, %s27
      %s37 = sphi 0, %s37
      %s39 = sphi 0, %s37
      %s40 = sphi 0, %s39
      %s54 = sphi 0, %s40
      %s58 = sphi 0, %s58
      %s60 = sphi 0, %s58
      %s61 = sphi 0, %s60
      %s75 = sphi 0, %s61
      %s79 = sphi 0, %s79
      %s81 = sphi 0, %s79
      %s82 = sphi 0, %s81
      %s96 = sphi 0, %s82
      %s100 = sphi 0, %s100
      %s102 = sphi 0, %s100
      %s103 = sphi 0, %s102
      %s117 = sphi 0, %s103
      %s121 = sphi 0, %s121
      %s123 = sphi 0, %s121
      %s124 = sphi 0, %s123
      %s138 = sphi 0, %s124
      %s142 = sphi 0, %s142
      %s144 = sphi 0, %s142
      %s145 = sphi 0, %s144
      %s159 = sphi 0, %s145
      %s163 = sphi 0, %s163
      %s165 = sphi 0, %s163
      %s166 = sphi 0, %s165
      %s180 = sphi 0, %s166
      %s190 = sphi 0, %s192
      %s193 = sphi 0, %s190
      %s194 = sphi 0, %s193
      %s210 = sphi 0, %s194
      %s220 = sphi 0, %s222
      %s223 = sphi 0, %s220
      %s224 = sphi 0, %s223
      %s240 = sphi 0, %s224
      %s250 = sphi 0, %s252
      %s253 = sphi 0, %s250
      %s254 = sphi 0, %s253
      %s270 = sphi 0, %s254
    $region4: #{decoder_forward.1} parent=1 // loop_header_branch
      %20 = sbr.rel (%p18) target = $region8
    $region5: #{decoder_forward.1} parent=1 // loop_body
      %s22 = ssub.s32 %s17, 1
      %s23 = ssub.s32 %s17, 2
      %s30 = sadd.s32 1, %s25
      %p31 = scmp.ge.s32.totalorder %s30, 2
      %s32 = scalar_select %p31, 0, %s30
      %s33 = sadd.s32 1, %s24
      %s34 = scalar_select %p31, %s33, %s24
      %p35 = scmp.ge.s32.totalorder %s34, 2
      %s36 = scalar_select %p35, 0, %s34
      %s38 = sadd.s32 %s37, 1
      %p41 = scmp.eq.s32.totalorder %s17, 3
      %p42 = scmp.ne.s32.totalorder %s37, %s39
      %p43 = scmp.eq.s32.totalorder %s17, 0
      %p44 = por %p42, %p43
      %p45 = scmp.ne.s32.totalorder %s37, %s39
      %p46 = scmp.eq.s32.totalorder %s22, 3
      %p47 = por %p45, %p46
      %p48 = scmp.ne.s32.totalorder %s39, %s40
      %p49 = scmp.eq.s32.totalorder %s22, 0
      %p50 = por %p48, %p49
      %p51 = scmp.ne.s32.totalorder %s39, %s40
      %p52 = scmp.eq.s32.totalorder %s23, 3
      %p53 = por %p51, %p52
      %p55 = scmp.ne.s32.totalorder %s40, %s54
      %p56 = scmp.eq.s32.totalorder %s23, 0
      %p57 = por %p55, %p56
      %s59 = sadd.s32 %s58, 1
      %p62 = scmp.eq.s32.totalorder %s17, 3
      %p63 = scmp.ne.s32.totalorder %s58, %s60
      %p64 = scmp.eq.s32.totalorder %s17, 0
      %p65 = por %p63, %p64
      %p66 = scmp.ne.s32.totalorder %s58, %s60
      %p67 = scmp.eq.s32.totalorder %s22, 3
      %p68 = por %p66, %p67
      %p69 = scmp.ne.s32.totalorder %s60, %s61
      %p70 = scmp.eq.s32.totalorder %s22, 0
      %p71 = por %p69, %p70
      %p72 = scmp.ne.s32.totalorder %s60, %s61
      %p73 = scmp.eq.s32.totalorder %s23, 3
      %p74 = por %p72, %p73
      %p76 = scmp.ne.s32.totalorder %s61, %s75
      %p77 = scmp.eq.s32.totalorder %s23, 0
      %p78 = por %p76, %p77
      %s80 = sadd.s32 %s79, 1
      %p83 = scmp.eq.s32.totalorder %s17, 3
      %p84 = scmp.ne.s32.totalorder %s79, %s81
      %p85 = scmp.eq.s32.totalorder %s17, 0
      %p86 = por %p84, %p85
      %p87 = scmp.ne.s32.totalorder %s79, %s81
      %p88 = scmp.eq.s32.totalorder %s22, 3
      %p89 = por %p87, %p88
      %p90 = scmp.ne.s32.totalorder %s81, %s82
      %p91 = scmp.eq.s32.totalorder %s22, 0
      %p92 = por %p90, %p91
      %p93 = scmp.ne.s32.totalorder %s81, %s82
      %p94 = scmp.eq.s32.totalorder %s23, 3
      %p95 = por %p93, %p94
      %p97 = scmp.ne.s32.totalorder %s82, %s96
      %p98 = scmp.eq.s32.totalorder %s23, 0
      %p99 = por %p97, %p98
      %s101 = sadd.s32 %s100, 1
      %p104 = scmp.eq.s32.totalorder %s17, 3
      %p105 = scmp.ne.s32.totalorder %s100, %s102
      %p106 = scmp.eq.s32.totalorder %s17, 0
      %p107 = por %p105, %p106
      %p108 = scmp.ne.s32.totalorder %s100, %s102
      %p109 = scmp.eq.s32.totalorder %s22, 3
      %p110 = por %p108, %p109
      %p111 = scmp.ne.s32.totalorder %s102, %s103
      %p112 = scmp.eq.s32.totalorder %s22, 0
      %p113 = por %p111, %p112
      %p114 = scmp.ne.s32.totalorder %s102, %s103
      %p115 = scmp.eq.s32.totalorder %s23, 3
      %p116 = por %p114, %p115
      %p118 = scmp.ne.s32.totalorder %s103, %s117
      %p119 = scmp.eq.s32.totalorder %s23, 0
      %p120 = por %p118, %p119
      %s122 = sadd.s32 %s121, 1
      %p125 = scmp.eq.s32.totalorder %s17, 3
      %p126 = scmp.ne.s32.totalorder %s121, %s123
      %p127 = scmp.eq.s32.totalorder %s17, 0
      %p128 = por %p126, %p127
      %p129 = scmp.ne.s32.totalorder %s121, %s123
      %p130 = scmp.eq.s32.totalorder %s22, 3
      %p131 = por %p129, %p130
      %p132 = scmp.ne.s32.totalorder %s123, %s124
      %p133 = scmp.eq.s32.totalorder %s22, 0
      %p134 = por %p132, %p133
      %p135 = scmp.ne.s32.totalorder %s123, %s124
      %p136 = scmp.eq.s32.totalorder %s23, 3
      %p137 = por %p135, %p136
      %p139 = scmp.ne.s32.totalorder %s124, %s138
      %p140 = scmp.eq.s32.totalorder %s23, 0
      %p141 = por %p139, %p140
      %s143 = sadd.s32 %s142, 1
      %p146 = scmp.eq.s32.totalorder %s17, 3
      %p147 = scmp.ne.s32.totalorder %s142, %s144
      %p148 = scmp.eq.s32.totalorder %s17, 0
      %p149 = por %p147, %p148
      %p150 = scmp.ne.s32.totalorder %s142, %s144
      %p151 = scmp.eq.s32.totalorder %s22, 3
      %p152 = por %p150, %p151
      %p153 = scmp.ne.s32.totalorder %s144, %s145
      %p154 = scmp.eq.s32.totalorder %s22, 0
      %p155 = por %p153, %p154
      %p156 = scmp.ne.s32.totalorder %s144, %s145
      %p157 = scmp.eq.s32.totalorder %s23, 3
      %p158 = por %p156, %p157
      %p160 = scmp.ne.s32.totalorder %s145, %s159
      %p161 = scmp.eq.s32.totalorder %s23, 0
      %p162 = por %p160, %p161
      %s164 = sadd.s32 %s163, 1
      %p167 = scmp.eq.s32.totalorder %s17, 3
      %p168 = scmp.ne.s32.totalorder %s163, %s165
      %p169 = scmp.eq.s32.totalorder %s17, 0
      %p170 = por %p168, %p169
      %p171 = scmp.ne.s32.totalorder %s163, %s165
      %p172 = scmp.eq.s32.totalorder %s22, 3
      %p173 = por %p171, %p172
      %p174 = scmp.ne.s32.totalorder %s165, %s166
      %p175 = scmp.eq.s32.totalorder %s22, 0
      %p176 = por %p174, %p175
      %p177 = scmp.ne.s32.totalorder %s165, %s166
      %p178 = scmp.eq.s32.totalorder %s23, 3
      %p179 = por %p177, %p178
      %p181 = scmp.ne.s32.totalorder %s166, %s180
      %p182 = scmp.eq.s32.totalorder %s23, 0
      %p183 = por %p181, %p182
      %s184 = smul.u32 %s24, 2
      %s185 = sadd.s32 %s184, %s25
      %s186 = smul.u32 %s36, 2
      %s187 = sadd.s32 %s186, %s32
      %s188 = ssub.s32 %s185, %s187
      %p189 = scmp.eq.s32.totalorder %s188, 0
      %s191 = sadd.s32 %s190, 1
      %s192 = scalar_select %p189, %s190, %s191
      %p195 = pneg %p189
      %p196 = scmp.eq.s32.totalorder %s17, 3
      %p197 = por %p195, %p196
      %p198 = scmp.ne.s32.totalorder %s190, %s193
      %p199 = scmp.eq.s32.totalorder %s17, 0
      %p200 = por %p198, %p199
      %p201 = scmp.ne.s32.totalorder %s190, %s193
      %p202 = scmp.eq.s32.totalorder %s22, 3
      %p203 = por %p201, %p202
      %p204 = scmp.ne.s32.totalorder %s193, %s194
      %p205 = scmp.eq.s32.totalorder %s22, 0
      %p206 = por %p204, %p205
      %p207 = scmp.ne.s32.totalorder %s193, %s194
      %p208 = scmp.eq.s32.totalorder %s23, 3
      %p209 = por %p207, %p208
      %p211 = scmp.ne.s32.totalorder %s194, %s210
      %p212 = scmp.eq.s32.totalorder %s23, 0
      %p213 = por %p211, %p212
      %s214 = smul.u32 %s24, 2
      %s215 = sadd.s32 %s214, %s25
      %s216 = smul.u32 %s36, 2
      %s217 = sadd.s32 %s216, %s32
      %s218 = ssub.s32 %s215, %s217
      %p219 = scmp.eq.s32.totalorder %s218, 0
      %s221 = sadd.s32 %s220, 1
      %s222 = scalar_select %p219, %s220, %s221
      %p225 = pneg %p219
      %p226 = scmp.eq.s32.totalorder %s17, 3
      %p227 = por %p225, %p226
      %p228 = scmp.ne.s32.totalorder %s220, %s223
      %p229 = scmp.eq.s32.totalorder %s17, 0
      %p230 = por %p228, %p229
      %p231 = scmp.ne.s32.totalorder %s220, %s223
      %p232 = scmp.eq.s32.totalorder %s22, 3
      %p233 = por %p231, %p232
      %p234 = scmp.ne.s32.totalorder %s223, %s224
      %p235 = scmp.eq.s32.totalorder %s22, 0
      %p236 = por %p234, %p235
      %p237 = scmp.ne.s32.totalorder %s223, %s224
      %p238 = scmp.eq.s32.totalorder %s23, 3
      %p239 = por %p237, %p238
      %p241 = scmp.ne.s32.totalorder %s224, %s240
      %p242 = scmp.eq.s32.totalorder %s23, 0
      %p243 = por %p241, %p242
      %s244 = smul.u32 %s24, 2
      %s245 = sadd.s32 %s244, %s25
      %s246 = smul.u32 %s36, 2
      %s247 = sadd.s32 %s246, %s32
      %s248 = ssub.s32 %s245, %s247
      %p249 = scmp.eq.s32.totalorder %s248, 0
      %s251 = sadd.s32 %s250, 1
      %s252 = scalar_select %p249, %s250, %s251
      %p255 = pneg %p249
      %p256 = scmp.eq.s32.totalorder %s17, 3
      %p257 = por %p255, %p256
      %p258 = scmp.ne.s32.totalorder %s250, %s253
      %p259 = scmp.eq.s32.totalorder %s17, 0
      %p260 = por %p258, %p259
      %p261 = scmp.ne.s32.totalorder %s250, %s253
      %p262 = scmp.eq.s32.totalorder %s22, 3
      %p263 = por %p261, %p262
      %p264 = scmp.ne.s32.totalorder %s253, %s254
      %p265 = scmp.eq.s32.totalorder %s22, 0
      %p266 = por %p264, %p265
      %p267 = scmp.ne.s32.totalorder %s253, %s254
      %p268 = scmp.eq.s32.totalorder %s23, 3
      %p269 = por %p267, %p268
      %p271 = scmp.ne.s32.totalorder %s254, %s270
      %p272 = scmp.eq.s32.totalorder %s23, 0
      %p273 = por %p271, %p272
      %p274 = scmp.le.s32.totalorder 1, %s17
      %p275 = scmp.lt.s32.totalorder %s17, 5
      %p276 = pnand %p274, %p275
      %p277 = pneg %p276
      // Predicated region
      $region9: #{decoder_forward.1} parent=5 // pred_check
        _
      $region10: #{decoder_forward.1} parent=5 // pred_check_branch
        %279 = sbr.rel (%p276) target = $region12
      $region11: #{decoder_forward.1} parent=5 // pred_region
        %s280 = ssub.s32 %s17, 1
        // Predicated region
        $region13: #{decoder_forward.1} parent=11 // pred_check
          %p281 = pneg %p50
        $region14: #{decoder_forward.1} parent=11 // pred_check_branch
          %283 = sbr.rel (%p281) target = $region16
        $region15: #{decoder_forward.1} parent=11 // pred_region
          _
        $region16: #{decoder_forward.1} parent=11 // pred_fallthru
          _
        // Predicated region
        $region17: #{decoder_forward.1} parent=11 // pred_check
          %p284 = pneg %p71
        $region18: #{decoder_forward.1} parent=11 // pred_check_branch
          %286 = sbr.rel (%p284) target = $region20
        $region19: #{decoder_forward.1} parent=11 // pred_region
          %s288 = ssub.s32 512, 512
          %289 = vsyncadd [#allocation4], %s288
          %s290 = sshll.u32 [#allocation3], 4
          %s291 = int_to_ptr.vmem [resolvable:$true] %s290
          %296 = dma.hbm_to_vmem [thread:$0]  %s1, 512, %s291, [#allocation4], 256, 256, 16
        $region20: #{decoder_forward.1} parent=11 // pred_fallthru
          _
        // Predicated region
        $region21: #{decoder_forward.1} parent=11 // pred_check
          %p297 = pneg %p92
        $region22: #{decoder_forward.1} parent=11 // pred_check_branch
          %299 = sbr.rel (%p297) target = $region24
        $region23: #{decoder_forward.1} parent=11 // pred_region
          _
        $region24: #{decoder_forward.1} parent=11 // pred_fallthru
          _
        // Predicated region
        $region25: #{decoder_forward.1} parent=11 // pred_check
          %p300 = pneg %p113
        $region26: #{decoder_forward.1} parent=11 // pred_check_branch
          %302 = sbr.rel (%p300) target = $region28
        $region27: #{decoder_forward.1} parent=11 // pred_region
          %s304 = ssub.s32 16384, 16384
          %305 = vsyncadd [#allocation6], %s304
          %s306 = sshll.u32 [#allocation5], 4
          %s307 = int_to_ptr.vmem [resolvable:$true] %s306
          %312 = dma.hbm_to_vmem [thread:$0]  %s3, 16384, %s307, [#allocation6], 256, 256, 16
        $region28: #{decoder_forward.1} parent=11 // pred_fallthru
          _
        // Predicated region
        $region29: #{decoder_forward.1} parent=11 // pred_check
          %p313 = pneg %p134
        $region30: #{decoder_forward.1} parent=11 // pred_check_branch
          %315 = sbr.rel (%p313) target = $region32
        $region31: #{decoder_forward.1} parent=11 // pred_region
          _
        $region32: #{decoder_forward.1} parent=11 // pred_fallthru
          _
        // Predicated region
        $region33: #{decoder_forward.1} parent=11 // pred_check
          %p316 = pneg %p155
        $region34: #{decoder_forward.1} parent=11 // pred_check_branch
          %318 = sbr.rel (%p316) target = $region36
        $region35: #{decoder_forward.1} parent=11 // pred_region
          _
        $region36: #{decoder_forward.1} parent=11 // pred_fallthru
          _
        // Predicated region
        $region37: #{decoder_forward.1} parent=11 // pred_check
          %p319 = pneg %p176
        $region38: #{decoder_forward.1} parent=11 // pred_check_branch
          %321 = sbr.rel (%p319) target = $region40
        $region39: #{decoder_forward.1} parent=11 // pred_region
          _
        $region40: #{decoder_forward.1} parent=11 // pred_fallthru
          _
      $region12: #{decoder_forward.1} parent=5 // pred_fallthru
        _
      %p322 = scmp.lt.s32.totalorder %s17, 4
      // Predicated region
      $region41: #{decoder_forward.1} parent=5 // pred_check
        %p323 = pneg %p322
      $region42: #{decoder_forward.1} parent=5 // pred_check_branch
        %325 = sbr.rel (%p323) target = $region44
      $region43: #{decoder_forward.1} parent=5 // pred_region
        // Predicated region
        $region45: #{decoder_forward.1} parent=43 // pred_check
          %p326 = pneg %p200
        $region46: #{decoder_forward.1} parent=43 // pred_check_branch
          %328 = sbr.rel (%p326) target = $region48
        $region47: #{decoder_forward.1} parent=43 // pred_region
          %s329 = sand.u32 %s17, 1
          %s330 = scalar_lea.sflag [#allocation4], %s329
          %s331 = sand.u32 %s190, 1
          %s332 = smul.addr %s331, 512
          %s333 = scalar_lea.vmem [#allocation7], %s332
          %s334 = smul.u32 %s24, 2
          %s335 = sadd.s32 %s334, %s25
          %s336 = smul.u32 2, %s335
          %s338 = ssub.s32 8192, 8192
          %339 = vsyncadd %s330, %s338
          %s340 = smul.addr %s336, 64
          %s341 = scalar_lea.hbm %s7, %s340
          %s342 = sshll.u32 %s333, 4
          %s343 = int_to_ptr.vmem [resolvable:$true] %s342
          %348 = dma.hbm_to_vmem [thread:$0]  %s341, 8192, %s343, %s330, 512, 128, 8
        $region48: #{decoder_forward.1} parent=43 // pred_fallthru
          _
        // Predicated region
        $region49: #{decoder_forward.1} parent=43 // pred_check
          %p349 = pneg %p230
        $region50: #{decoder_forward.1} parent=43 // pred_check_branch
          %351 = sbr.rel (%p349) target = $region52
        $region51: #{decoder_forward.1} parent=43 // pred_region
          %s352 = smul.u32 %s24, 2
          %s353 = sadd.s32 %s352, %s25
          %s354 = smul.u32 2, %s353
          %p355 = scmp.lt.s32.totalorder %s354, 7
          %s356 = scalar_select %p355, %s354, 7
          %s357 = scalar_lea.vmem %s8, %s356
          %s358 = smul.u32 %s24, 2
          %s359 = sadd.s32 %s358, %s25
          %s360 = smul.u32 2, %s359
        $region52: #{decoder_forward.1} parent=43 // pred_fallthru
          _
      $region44: #{decoder_forward.1} parent=5 // pred_fallthru
        _
      %p361 = scmp.le.s32.totalorder 1, %s17
      %p362 = scmp.lt.s32.totalorder %s17, 5
      %p363 = pnand %p361, %p362
      %p364 = pneg %p363
      // Predicated region
      $region53: #{decoder_forward.1} parent=5 // pred_check
        _
      $region54: #{decoder_forward.1} parent=5 // pred_check_branch
        %366 = sbr.rel (%p363) target = $region56
      $region55: #{decoder_forward.1} parent=5 // pred_region
        %s367 = ssub.s32 %s17, 1
        // Predicated region
        $region57: #{decoder_forward.1} parent=55 // pred_check
          %p368 = pneg %p71
        $region58: #{decoder_forward.1} parent=55 // pred_check_branch
          %370 = sbr.rel (%p368) target = $region60
        $region59: #{decoder_forward.1} parent=55 // pred_region
          %371 = dma.done [#allocation4], 512
        $region60: #{decoder_forward.1} parent=55 // pred_fallthru
          _
        // Predicated region
        $region61: #{decoder_forward.1} parent=55 // pred_check
          %p372 = pneg %p113
        $region62: #{decoder_forward.1} parent=55 // pred_check_branch
          %374 = sbr.rel (%p372) target = $region64
        $region63: #{decoder_forward.1} parent=55 // pred_region
          %375 = dma.done [#allocation6], 16384
        $region64: #{decoder_forward.1} parent=55 // pred_fallthru
          _
        %s376 = sand.u32 %s22, 1
        %s377 = scalar_lea.sflag [#allocation4], %s376
        %s378 = sand.u32 %s193, 1
        %s379 = smul.addr %s378, 512
        %s380 = scalar_lea.vmem [#allocation7], %s379
        // Predicated region
        $region65: #{decoder_forward.1} parent=55 // pred_check
          %p381 = pneg %p206
        $region66: #{decoder_forward.1} parent=55 // pred_check_branch
          %383 = sbr.rel (%p381) target = $region68
        $region67: #{decoder_forward.1} parent=55 // pred_region
          %384 = dma.done %s377, 8192
        $region68: #{decoder_forward.1} parent=55 // pred_fallthru
          _
        %p385 = pneg %p50
        %p386 = pneg %p47
        %p387 = pneg %p71
        %p388 = pneg %p68
        %p389 = pneg %p92
        %p390 = pneg %p89
        %p391 = pneg %p113
        %p392 = pneg %p110
        %p393 = pneg %p134
        %p394 = pneg %p131
        %p395 = pneg %p155
        %p396 = pneg %p152
        %p397 = pneg %p176
        %p398 = pneg %p173
        %s399 = sand.u32 %s22, 1
        %s400 = scalar_lea.sflag [#allocation4], %s399
        %s401 = sand.u32 %s193, 1
        %s402 = smul.addr %s401, 512
        %s403 = scalar_lea.vmem [#allocation7], %s402
        %p404 = pneg %p206
        %p405 = pneg %p203
        %s406 = smul.u32 %s26, 2
        %s407 = sadd.s32 %s406, %s27
        %s408 = smul.u32 2, %s407
        %p409 = scmp.lt.s32.totalorder %s408, 7
        %s410 = scalar_select %p409, %s408, 7
        %s411 = scalar_lea.vmem %s8, %s410
        %p412 = pneg %p236
        %p413 = pneg %p233
        %p414 = pneg %p266
        %p415 = pneg %p263
        %s416 = sand.u32 %s253, 1
        %s417 = sand.u32 %s253, 1
        %s418 = smul.addr %s417, 32
        %s419 = scalar_lea.vmem [#allocation8], %s418
        %s420 = smul.u32 %s26, 2
        %s421 = sadd.s32 %s420, %s27
        %s422 = smul.u32 2, %s421
        %s423 = smul.u32 %s26, 2
        %s424 = sadd.s32 %s423, %s27
        %s425 = smul.u32 2, %s424
        %p426 = scmp.lt.s32.totalorder %s425, 7
        %s427 = scalar_select %p426, %s425, 7
        %s428 = scalar_lea.vmem %s8, %s427
        %s429 = smul.u32 %s26, 2
        %s430 = sadd.s32 %s429, %s27
        %s431 = smul.u32 2, %s430
        %s432 = smul.u32 %s26, 2
        %s433 = sadd.s32 %s432, %s27
        %s434 = smul.u32 2, %s433
        %p436 = scmp.eq.s32.totalorder %s27, 0
        // Predicated region
        $region69: #{decoder_forward.1} parent=55 // pred_check
          %p437 = pneg %p436
        $region70: #{decoder_forward.1} parent=55 // pred_check_branch
          %439 = sbr.rel (%p437) target = $region72
        $region71: #{decoder_forward.1} parent=55 // pred_region
          %v440 = vld [vmem:[%s0] sm:$0xff]
          %v441 = vld [vmem:[%s0 + $0x8] sm:$0xff]
          %v442 = vpack.c.bf16 %v441, %v440
          %v443 = vld [vmem:[#allocation3] sm:$0xff]
          %v444 = vld [vmem:[#allocation3 + $0x8] sm:$0xff]
          %v445 = vld [vmem:[#allocation3 + $0x10] sm:$0xff]
          %v446 = vld [vmem:[#allocation3 + $0x18] sm:$0xff]
          %v447 = vld [vmem:[%s2] sm:$0xf]
          %v449 = vlaneseq
          %v450 = vshrl.u32 %v449, 7
          %v451 = vsub.s32 0, %v450
          %v452 = vrot.slane %v447, %v451
          %v453 = vlaneseq
          %v454 = vshrl.u32 %v453, 7
          %v455 = vsub.s32 1, %v454
          %v456 = vrot.slane %v447, %v455
          %v457 = vlaneseq
          %v458 = vshrl.u32 %v457, 7
          %v459 = vsub.s32 2, %v458
          %v460 = vrot.slane %v447, %v459
          %v461 = vlaneseq
          %v462 = vshrl.u32 %v461, 7
          %v463 = vsub.s32 3, %v462
          %v464 = vrot.slane %v447, %v463
          %v473 = vunpack.c.l.b16 %v443
          %v474 = vunpack.c.h.b16 %v443
          %v475 = vunpack.c.l.b16 %v444
          %v476 = vunpack.c.h.b16 %v444
          %v477 = vunpack.c.l.b16 %v445
          %v478 = vunpack.c.h.b16 %v445
          %v479 = vunpack.c.l.b16 %v446
          %v480 = vunpack.c.h.b16 %v446
          %v481 = vpack.c.b16 %v477, %v473
          %v482 = vpack.c.b16 %v478, %v474
          %v483 = vpack.c.b16 %v479, %v475
          %v484 = vpack.c.b16 %v480, %v476
          %vm489 = vcmask 130048
          %v491 = vsel %vm489, %v442, 0
          %493 = vmatprep.subr.bf16.mxu0 %v482
          %494 = vmatpush1.bf16.msra.mxu0 %v481
          %495 = vmatprep.subr.bf16.mxu0 0
          %496 = vmatpush1.bf16.msra.mxu0 0
          %497 = vmatprep.subr.bf16.mxu0 0
          %498 = vmatpush1.bf16.msra.mxu0 0
          %499 = vmatprep.subr.bf16.mxu0 0
          %500 = vmatpush1.bf16.msra.mxu0 0
          %501 = vmatprep.subr.bf16.mxu0 0
          %502 = vmatpush1.bf16.msra.mxu0 0
          %503 = vmatprep.subr.bf16.mxu0 0
          %504 = vmatpush1.bf16.msra.mxu0 0
          %505 = vmatprep.subr.bf16.mxu0 0
          %506 = vmatpush1.bf16.msra.mxu0 0
          %507 = vmatprep.subr.bf16.mxu0 0
          %508 = vmatpush1.bf16.msra.mxu0 0
          %509 = vmatprep.subr.bf16.mxu0 0
          %510 = vmatpush1.bf16.msra.mxu0 0
          %511 = vmatprep.subr.bf16.mxu0 0
          %512 = vmatpush1.bf16.msra.mxu0 0
          %513 = vmatprep.subr.bf16.mxu0 0
          %514 = vmatpush1.bf16.msra.mxu0 0
          %515 = vmatprep.subr.bf16.mxu0 0
          %516 = vmatpush1.bf16.msra.mxu0 0
          %517 = vmatprep.subr.bf16.mxu0 0
          %518 = vmatpush1.bf16.msra.mxu0 0
          %519 = vmatprep.subr.bf16.mxu0 0
          %520 = vmatpush1.bf16.msra.mxu0 0
          %521 = vmatprep.subr.bf16.mxu0 0
          %522 = vmatpush1.bf16.msra.mxu0 0
          %523 = vmatprep.subr.bf16.mxu0 0
          %524 = vmatpush1.bf16.msra.mxu0 0
          %525 = vmatprep.mubr.bf16.mxu0 0
          %526 = vmatmul.mubr.bf16.gmra.mrb[0].mxu0 %v491
          %v527 = vpop.f32.mrb[0].mxu0
          %v528 = vadd.f32 %v452, %v527
          %v529 = vpop.f32.mrb[0].mxu0
          %v530 = vadd.f32 %v456, %v529
          %v531 = vpop.f32.mrb[0].mxu0
          %v532 = vadd.f32 %v452, %v531
          %v533 = vpop.f32.mrb[0].mxu0
          %v534 = vadd.f32 %v456, %v533
          %535 = vdwg.mxu0
          %536 = vmatprep.subr.bf16.mxu0 %v484
          %537 = vmatpush1.bf16.msra.mxu0 %v483
          %538 = vmatprep.subr.bf16.mxu0 0
          %539 = vmatpush1.bf16.msra.mxu0 0
          %540 = vmatprep.subr.bf16.mxu0 0
          %541 = vmatpush1.bf16.msra.mxu0 0
          %542 = vmatprep.subr.bf16.mxu0 0
          %543 = vmatpush1.bf16.msra.mxu0 0
          %544 = vmatprep.subr.bf16.mxu0 0
          %545 = vmatpush1.bf16.msra.mxu0 0
          %546 = vmatprep.subr.bf16.mxu0 0
          %547 = vmatpush1.bf16.msra.mxu0 0
          %548 = vmatprep.subr.bf16.mxu0 0
          %549 = vmatpush1.bf16.msra.mxu0 0
          %550 = vmatprep.subr.bf16.mxu0 0
          %551 = vmatpush1.bf16.msra.mxu0 0
          %552 = vmatprep.subr.bf16.mxu0 0
          %553 = vmatpush1.bf16.msra.mxu0 0
          %554 = vmatprep.subr.bf16.mxu0 0
          %555 = vmatpush1.bf16.msra.mxu0 0
          %556 = vmatprep.subr.bf16.mxu0 0
          %557 = vmatpush1.bf16.msra.mxu0 0
          %558 = vmatprep.subr.bf16.mxu0 0
          %559 = vmatpush1.bf16.msra.mxu0 0
          %560 = vmatprep.subr.bf16.mxu0 0
          %561 = vmatpush1.bf16.msra.mxu0 0
          %562 = vmatprep.subr.bf16.mxu0 0
          %563 = vmatpush1.bf16.msra.mxu0 0
          %564 = vmatprep.subr.bf16.mxu0 0
          %565 = vmatpush1.bf16.msra.mxu0 0
          %566 = vmatprep.subr.bf16.mxu0 0
          %567 = vmatpush1.bf16.msra.mxu0 0
          %568 = vmatprep.mubr.bf16.mxu0 0
          %569 = vmatmul.mubr.bf16.gmra.mrb[0].mxu0 %v491
          %v570 = vpop.f32.mrb[0].mxu0
          %v571 = vadd.f32 %v460, %v570
          %v572 = vpop.f32.mrb[0].mxu0
          %v573 = vadd.f32 %v464, %v572
          %v574 = vpop.f32.mrb[0].mxu0
          %v575 = vadd.f32 %v460, %v574
          %v576 = vpop.f32.mrb[0].mxu0
          %v577 = vadd.f32 %v464, %v576
          %578 = vdwg.mxu0
          %v579 = vmul.f32 %v528, 0.2
          %v580 = vmul.f32 %v530, 0.2
          %v581 = vmul.f32 %v571, 0.2
          %v582 = vmul.f32 %v573, 0.2
          %v583 = vmul.f32 %v532, 0.2
          %v584 = vmul.f32 %v534, 0.2
          %v585 = vmul.f32 %v575, 0.2
          %v586 = vmul.f32 %v577, 0.2
          %v587 = vmax.f32 %v528, %v579
          %v588 = vmax.f32 %v530, %v580
          %v589 = vmax.f32 %v571, %v581
          %v590 = vmax.f32 %v573, %v582
          %v591 = vmax.f32 %v532, %v583
          %v592 = vmax.f32 %v534, %v584
          %v593 = vmax.f32 %v575, %v585
          %v594 = vmax.f32 %v577, %v586
          %v595 = vpack.c.bf16 %v591, %v587
          %v596 = vpack.c.bf16 %v592, %v588
          %v597 = vpack.c.bf16 %v593, %v589
          %v598 = vpack.c.bf16 %v594, %v590
          %v599 = vld [vmem:[#allocation5] sm:$0xff]
          %v600 = vld [vmem:[#allocation5 + $0x8] sm:$0xff]
          %v601 = vld [vmem:[#allocation5 + $0x10] sm:$0xff]
          %v602 = vld [vmem:[#allocation5 + $0x18] sm:$0xff]
          %v603 = vld [vmem:[#allocation5 + $0x20] sm:$0xff]
          %v604 = vld [vmem:[#allocation5 + $0x28] sm:$0xff]
          %v605 = vld [vmem:[#allocation5 + $0x30] sm:$0xff]
          %v606 = vld [vmem:[#allocation5 + $0x38] sm:$0xff]
          %v607 = vld [vmem:[#allocation5 + $0x40] sm:$0xff]
          %v608 = vld [vmem:[#allocation5 + $0x48] sm:$0xff]
          %v609 = vld [vmem:[#allocation5 + $0x50] sm:$0xff]
          %v610 = vld [vmem:[#allocation5 + $0x58] sm:$0xff]
          %v611 = vld [vmem:[#allocation5 + $0x60] sm:$0xff]
          %v612 = vld [vmem:[#allocation5 + $0x68] sm:$0xff]
          %v613 = vld [vmem:[#allocation5 + $0x70] sm:$0xff]
          %v614 = vld [vmem:[#allocation5 + $0x78] sm:$0xff]
          %v615 = vld [vmem:[#allocation5 + $0x80] sm:$0xff]
          %v616 = vld [vmem:[#allocation5 + $0x88] sm:$0xff]
          %v617 = vld [vmem:[#allocation5 + $0x90] sm:$0xff]
          %v618 = vld [vmem:[#allocation5 + $0x98] sm:$0xff]
          %v619 = vld [vmem:[#allocation5 + $0xa0] sm:$0xff]
          %v620 = vld [vmem:[#allocation5 + $0xa8] sm:$0xff]
          %v621 = vld [vmem:[#allocation5 + $0xb0] sm:$0xff]
          %v622 = vld [vmem:[#allocation5 + $0xb8] sm:$0xff]
          %v623 = vld [vmem:[#allocation5 + $0xc0] sm:$0xff]
          %v624 = vld [vmem:[#allocation5 + $0xc8] sm:$0xff]
          %v625 = vld [vmem:[#allocation5 + $0xd0] sm:$0xff]
          %v626 = vld [vmem:[#allocation5 + $0xd8] sm:$0xff]
          %v627 = vld [vmem:[#allocation5 + $0xe0] sm:$0xff]
          %v628 = vld [vmem:[#allocation5 + $0xe8] sm:$0xff]
          %v629 = vld [vmem:[#allocation5 + $0xf0] sm:$0xff]
          %v630 = vld [vmem:[#allocation5 + $0xf8] sm:$0xff]
          %v631 = vld [vmem:[#allocation5 + $0x100] sm:$0xff]
          %v632 = vld [vmem:[#allocation5 + $0x108] sm:$0xff]
          %v633 = vld [vmem:[#allocation5 + $0x110] sm:$0xff]
          %v634 = vld [vmem:[#allocation5 + $0x118] sm:$0xff]
          %v635 = vld [vmem:[#allocation5 + $0x120] sm:$0xff]
          %v636 = vld [vmem:[#allocation5 + $0x128] sm:$0xff]
          %v637 = vld [vmem:[#allocation5 + $0x130] sm:$0xff]
          %v638 = vld [vmem:[#allocation5 + $0x138] sm:$0xff]
          %v639 = vld [vmem:[#allocation5 + $0x140] sm:$0xff]
          %v640 = vld [vmem:[#allocation5 + $0x148] sm:$0xff]
          %v641 = vld [vmem:[#allocation5 + $0x150] sm:$0xff]
          %v642 = vld [vmem:[#allocation5 + $0x158] sm:$0xff]
          %v643 = vld [vmem:[#allocation5 + $0x160] sm:$0xff]
          %v644 = vld [vmem:[#allocation5 + $0x168] sm:$0xff]
          %v645 = vld [vmem:[#allocation5 + $0x170] sm:$0xff]
          %v646 = vld [vmem:[#allocation5 + $0x178] sm:$0xff]
          %v647 = vld [vmem:[#allocation5 + $0x180] sm:$0xff]
          %v648 = vld [vmem:[#allocation5 + $0x188] sm:$0xff]
          %v649 = vld [vmem:[#allocation5 + $0x190] sm:$0xff]
          %v650 = vld [vmem:[#allocation5 + $0x198] sm:$0xff]
          %v651 = vld [vmem:[#allocation5 + $0x1a0] sm:$0xff]
          %v652 = vld [vmem:[#allocation5 + $0x1a8] sm:$0xff]
          %v653 = vld [vmem:[#allocation5 + $0x1b0] sm:$0xff]
          %v654 = vld [vmem:[#allocation5 + $0x1b8] sm:$0xff]
          %v655 = vld [vmem:[#allocation5 + $0x1c0] sm:$0xff]
          %v656 = vld [vmem:[#allocation5 + $0x1c8] sm:$0xff]
          %v657 = vld [vmem:[#allocation5 + $0x1d0] sm:$0xff]
          %v658 = vld [vmem:[#allocation5 + $0x1d8] sm:$0xff]
          %v659 = vld [vmem:[#allocation5 + $0x1e0] sm:$0xff]
          %v660 = vld [vmem:[#allocation5 + $0x1e8] sm:$0xff]
          %v661 = vld [vmem:[#allocation5 + $0x1f0] sm:$0xff]
          %v662 = vld [vmem:[#allocation5 + $0x1f8] sm:$0xff]
          %v663 = vld [vmem:[#allocation5 + $0x200] sm:$0xff]
          %v664 = vld [vmem:[#allocation5 + $0x208] sm:$0xff]
          %v665 = vld [vmem:[#allocation5 + $0x210] sm:$0xff]
          %v666 = vld [vmem:[#allocation5 + $0x218] sm:$0xff]
          %v667 = vld [vmem:[#allocation5 + $0x220] sm:$0xff]
          %v668 = vld [vmem:[#allocation5 + $0x228] sm:$0xff]
          %v669 = vld [vmem:[#allocation5 + $0x230] sm:$0xff]
          %v670 = vld [vmem:[#allocation5 + $0x238] sm:$0xff]
          %v671 = vld [vmem:[#allocation5 + $0x240] sm:$0xff]
          %v672 = vld [vmem:[#allocation5 + $0x248] sm:$0xff]
          %v673 = vld [vmem:[#allocation5 + $0x250] sm:$0xff]
          %v674 = vld [vmem:[#allocation5 + $0x258] sm:$0xff]
          %v675 = vld [vmem:[#allocation5 + $0x260] sm:$0xff]
          %v676 = vld [vmem:[#allocation5 + $0x268] sm:$0xff]
          %v677 = vld [vmem:[#allocation5 + $0x270] sm:$0xff]
          %v678 = vld [vmem:[#allocation5 + $0x278] sm:$0xff]
          %v679 = vld [vmem:[#allocation5 + $0x280] sm:$0xff]
          %v680 = vld [vmem:[#allocation5 + $0x288] sm:$0xff]
          %v681 = vld [vmem:[#allocation5 + $0x290] sm:$0xff]
          %v682 = vld [vmem:[#allocation5 + $0x298] sm:$0xff]
          %v683 = vld [vmem:[#allocation5 + $0x2a0] sm:$0xff]
          %v684 = vld [vmem:[#allocation5 + $0x2a8] sm:$0xff]
          %v685 = vld [vmem:[#allocation5 + $0x2b0] sm:$0xff]
          %v686 = vld [vmem:[#allocation5 + $0x2b8] sm:$0xff]
          %v687 = vld [vmem:[#allocation5 + $0x2c0] sm:$0xff]
          %v688 = vld [vmem:[#allocation5 + $0x2c8] sm:$0xff]
          %v689 = vld [vmem:[#allocation5 + $0x2d0] sm:$0xff]
          %v690 = vld [vmem:[#allocation5 + $0x2d8] sm:$0xff]
          %v691 = vld [vmem:[#allocation5 + $0x2e0] sm:$0xff]
          %v692 = vld [vmem:[#allocation5 + $0x2e8] sm:$0xff]
          %v693 = vld [vmem:[#allocation5 + $0x2f0] sm:$0xff]
          %v694 = vld [vmem:[#allocation5 + $0x2f8] sm:$0xff]
          %v695 = vld [vmem:[#allocation5 + $0x300] sm:$0xff]
          %v696 = vld [vmem:[#allocation5 + $0x308] sm:$0xff]
          %v697 = vld [vmem:[#allocation5 + $0x310] sm:$0xff]
          %v698 = vld [vmem:[#allocation5 + $0x318] sm:$0xff]
          %v699 = vld [vmem:[#allocation5 + $0x320] sm:$0xff]
          %v700 = vld [vmem:[#allocation5 + $0x328] sm:$0xff]
          %v701 = vld [vmem:[#allocation5 + $0x330] sm:$0xff]
          %v702 = vld [vmem:[#allocation5 + $0x338] sm:$0xff]
          %v703 = vld [vmem:[#allocation5 + $0x340] sm:$0xff]
          %v704 = vld [vmem:[#allocation5 + $0x348] sm:$0xff]
          %v705 = vld [vmem:[#allocation5 + $0x350] sm:$0xff]
          %v706 = vld [vmem:[#allocation5 + $0x358] sm:$0xff]
          %v707 = vld [vmem:[#allocation5 + $0x360] sm:$0xff]
          %v708 = vld [vmem:[#allocation5 + $0x368] sm:$0xff]
          %v709 = vld [vmem:[#allocation5 + $0x370] sm:$0xff]
          %v710 = vld [vmem:[#allocation5 + $0x378] sm:$0xff]
          %v711 = vld [vmem:[#allocation5 + $0x380] sm:$0xff]
          %v712 = vld [vmem:[#allocation5 + $0x388] sm:$0xff]
          %v713 = vld [vmem:[#allocation5 + $0x390] sm:$0xff]
          %v714 = vld [vmem:[#allocation5 + $0x398] sm:$0xff]
          %v715 = vld [vmem:[#allocation5 + $0x3a0] sm:$0xff]
          %v716 = vld [vmem:[#allocation5 + $0x3a8] sm:$0xff]
          %v717 = vld [vmem:[#allocation5 + $0x3b0] sm:$0xff]
          %v718 = vld [vmem:[#allocation5 + $0x3b8] sm:$0xff]
          %v719 = vld [vmem:[#allocation5 + $0x3c0] sm:$0xff]
          %v720 = vld [vmem:[#allocation5 + $0x3c8] sm:$0xff]
          %v721 = vld [vmem:[#allocation5 + $0x3d0] sm:$0xff]
          %v722 = vld [vmem:[#allocation5 + $0x3d8] sm:$0xff]
          %v723 = vld [vmem:[#allocation5 + $0x3e0] sm:$0xff]
          %v724 = vld [vmem:[#allocation5 + $0x3e8] sm:$0xff]
          %v725 = vld [vmem:[#allocation5 + $0x3f0] sm:$0xff]
          %v726 = vld [vmem:[#allocation5 + $0x3f8] sm:$0xff]
          %v727 = vld [vmem:[%s4] sm:$0xf]
          %v729 = vlaneseq
          %v730 = vshrl.u32 %v729, 7
          %v731 = vsub.s32 0, %v730
          %v732 = vrot.slane %v727, %v731
          %v733 = vlaneseq
          %v734 = vshrl.u32 %v733, 7
          %v735 = vsub.s32 1, %v734
          %v736 = vrot.slane %v727, %v735
          %v737 = vlaneseq
          %v738 = vshrl.u32 %v737, 7
          %v739 = vsub.s32 2, %v738
          %v740 = vrot.slane %v727, %v739
          %v741 = vlaneseq
          %v742 = vshrl.u32 %v741, 7
          %v743 = vsub.s32 3, %v742
          %v744 = vrot.slane %v727, %v743
          %v877 = vunpack.c.l.b16 %v599
          %v878 = vunpack.c.h.b16 %v599
          %v879 = vunpack.c.l.b16 %v600
          %v880 = vunpack.c.h.b16 %v600
          %v881 = vunpack.c.l.b16 %v601
          %v882 = vunpack.c.h.b16 %v601
          %v883 = vunpack.c.l.b16 %v602
          %v884 = vunpack.c.h.b16 %v602
          %v885 = vunpack.c.l.b16 %v603
          %v886 = vunpack.c.h.b16 %v603
          %v887 = vunpack.c.l.b16 %v604
          %v888 = vunpack.c.h.b16 %v604
          %v889 = vunpack.c.l.b16 %v605
          %v890 = vunpack.c.h.b16 %v605
          %v891 = vunpack.c.l.b16 %v606
          %v892 = vunpack.c.h.b16 %v606
          %v893 = vunpack.c.l.b16 %v607
          %v894 = vunpack.c.h.b16 %v607
          %v895 = vunpack.c.l.b16 %v608
          %v896 = vunpack.c.h.b16 %v608
          %v897 = vunpack.c.l.b16 %v609
          %v898 = vunpack.c.h.b16 %v609
          %v899 = vunpack.c.l.b16 %v610
          %v900 = vunpack.c.h.b16 %v610
          %v901 = vunpack.c.l.b16 %v611
          %v902 = vunpack.c.h.b16 %v611
          %v903 = vunpack.c.l.b16 %v612
          %v904 = vunpack.c.h.b16 %v612
          %v905 = vunpack.c.l.b16 %v613
          %v906 = vunpack.c.h.b16 %v613
          %v907 = vunpack.c.l.b16 %v614
          %v908 = vunpack.c.h.b16 %v614
          %v909 = vunpack.c.l.b16 %v615
          %v910 = vunpack.c.h.b16 %v615
          %v911 = vunpack.c.l.b16 %v616
          %v912 = vunpack.c.h.b16 %v616
          %v913 = vunpack.c.l.b16 %v617
          %v914 = vunpack.c.h.b16 %v617
          %v915 = vunpack.c.l.b16 %v618
          %v916 = vunpack.c.h.b16 %v618
          %v917 = vunpack.c.l.b16 %v619
          %v918 = vunpack.c.h.b16 %v619
          %v919 = vunpack.c.l.b16 %v620
          %v920 = vunpack.c.h.b16 %v620
          %v921 = vunpack.c.l.b16 %v621
          %v922 = vunpack.c.h.b16 %v621
          %v923 = vunpack.c.l.b16 %v622
          %v924 = vunpack.c.h.b16 %v622
          %v925 = vunpack.c.l.b16 %v623
          %v926 = vunpack.c.h.b16 %v623
          %v927 = vunpack.c.l.b16 %v624
          %v928 = vunpack.c.h.b16 %v624
          %v929 = vunpack.c.l.b16 %v625
          %v930 = vunpack.c.h.b16 %v625
          %v931 = vunpack.c.l.b16 %v626
          %v932 = vunpack.c.h.b16 %v626
          %v933 = vunpack.c.l.b16 %v627
          %v934 = vunpack.c.h.b16 %v627
          %v935 = vunpack.c.l.b16 %v628
          %v936 = vunpack.c.h.b16 %v628
          %v937 = vunpack.c.l.b16 %v629
          %v938 = vunpack.c.h.b16 %v629
          %v939 = vunpack.c.l.b16 %v630
          %v940 = vunpack.c.h.b16 %v630
          %v941 = vunpack.c.l.b16 %v631
          %v942 = vunpack.c.h.b16 %v631
          %v943 = vunpack.c.l.b16 %v632
          %v944 = vunpack.c.h.b16 %v632
          %v945 = vunpack.c.l.b16 %v633
          %v946 = vunpack.c.h.b16 %v633
          %v947 = vunpack.c.l.b16 %v634
          %v948 = vunpack.c.h.b16 %v634
          %v949 = vunpack.c.l.b16 %v635
          %v950 = vunpack.c.h.b16 %v635
          %v951 = vunpack.c.l.b16 %v636
          %v952 = vunpack.c.h.b16 %v636
          %v953 = vunpack.c.l.b16 %v637
          %v954 = vunpack.c.h.b16 %v637
          %v955 = vunpack.c.l.b16 %v638
          %v956 = vunpack.c.h.b16 %v638
          %v957 = vunpack.c.l.b16 %v639
          %v958 = vunpack.c.h.b16 %v639
          %v959 = vunpack.c.l.b16 %v640
          %v960 = vunpack.c.h.b16 %v640
          %v961 = vunpack.c.l.b16 %v641
          %v962 = vunpack.c.h.b16 %v641
          %v963 = vunpack.c.l.b16 %v642
          %v964 = vunpack.c.h.b16 %v642
          %v965 = vunpack.c.l.b16 %v643
          %v966 = vunpack.c.h.b16 %v643
          %v967 = vunpack.c.l.b16 %v644
          %v968 = vunpack.c.h.b16 %v644
          %v969 = vunpack.c.l.b16 %v645
          %v970 = vunpack.c.h.b16 %v645
          %v971 = vunpack.c.l.b16 %v646
          %v972 = vunpack.c.h.b16 %v646
          %v973 = vunpack.c.l.b16 %v647
          %v974 = vunpack.c.h.b16 %v647
          %v975 = vunpack.c.l.b16 %v648
          %v976 = vunpack.c.h.b16 %v648
          %v977 = vunpack.c.l.b16 %v649
          %v978 = vunpack.c.h.b16 %v649
          %v979 = vunpack.c.l.b16 %v650
          %v980 = vunpack.c.h.b16 %v650
          %v981 = vunpack.c.l.b16 %v651
          %v982 = vunpack.c.h.b16 %v651
          %v983 = vunpack.c.l.b16 %v652
          %v984 = vunpack.c.h.b16 %v652
          %v985 = vunpack.c.l.b16 %v653
          %v986 = vunpack.c.h.b16 %v653
          %v987 = vunpack.c.l.b16 %v654
          %v988 = vunpack.c.h.b16 %v654
          %v989 = vunpack.c.l.b16 %v655
          %v990 = vunpack.c.h.b16 %v655
          %v991 = vunpack.c.l.b16 %v656
          %v992 = vunpack.c.h.b16 %v656
          %v993 = vunpack.c.l.b16 %v657
          %v994 = vunpack.c.h.b16 %v657
          %v995 = vunpack.c.l.b16 %v658
          %v996 = vunpack.c.h.b16 %v658
          %v997 = vunpack.c.l.b16 %v659
          %v998 = vunpack.c.h.b16 %v659
          %v999 = vunpack.c.l.b16 %v660
          %v1000 = vunpack.c.h.b16 %v660
          %v1001 = vunpack.c.l.b16 %v661
          %v1002 = vunpack.c.h.b16 %v661
          %v1003 = vunpack.c.l.b16 %v662
          %v1004 = vunpack.c.h.b16 %v662
          %v1005 = vunpack.c.l.b16 %v663
          %v1006 = vunpack.c.h.b16 %v663
          %v1007 = vunpack.c.l.b16 %v664
          %v1008 = vunpack.c.h.b16 %v664
          %v1009 = vunpack.c.l.b16 %v665
          %v1010 = vunpack.c.h.b16 %v665
          %v1011 = vunpack.c.l.b16 %v666
          %v1012 = vunpack.c.h.b16 %v666
          %v1013 = vunpack.c.l.b16 %v667
          %v1014 = vunpack.c.h.b16 %v667
          %v1015 = vunpack.c.l.b16 %v668
          %v1016 = vunpack.c.h.b16 %v668
          %v1017 = vunpack.c.l.b16 %v669
          %v1018 = vunpack.c.h.b16 %v669
          %v1019 = vunpack.c.l.b16 %v670
          %v1020 = vunpack.c.h.b16 %v670
          %v1021 = vunpack.c.l.b16 %v671
          %v1022 = vunpack.c.h.b16 %v671
          %v1023 = vunpack.c.l.b16 %v672
          %v1024 = vunpack.c.h.b16 %v672
          %v1025 = vunpack.c.l.b16 %v673
          %v1026 = vunpack.c.h.b16 %v673
          %v1027 = vunpack.c.l.b16 %v674
          %v1028 = vunpack.c.h.b16 %v674
          %v1029 = vunpack.c.l.b16 %v675
          %v1030 = vunpack.c.h.b16 %v675
          %v1031 = vunpack.c.l.b16 %v676
          %v1032 = vunpack.c.h.b16 %v676
          %v1033 = vunpack.c.l.b16 %v677
          %v1034 = vunpack.c.h.b16 %v677
          %v1035 = vunpack.c.l.b16 %v678
          %v1036 = vunpack.c.h.b16 %v678
          %v1037 = vunpack.c.l.b16 %v679
          %v1038 = vunpack.c.h.b16 %v679
          %v1039 = vunpack.c.l.b16 %v680
          %v1040 = vunpack.c.h.b16 %v680
          %v1041 = vunpack.c.l.b16 %v681
          %v1042 = vunpack.c.h.b16 %v681
          %v1043 = vunpack.c.l.b16 %v682
          %v1044 = vunpack.c.h.b16 %v682
          %v1045 = vunpack.c.l.b16 %v683
          %v1046 = vunpack.c.h.b16 %v683
          %v1047 = vunpack.c.l.b16 %v684
          %v1048 = vunpack.c.h.b16 %v684
          %v1049 = vunpack.c.l.b16 %v685
          %v1050 = vunpack.c.h.b16 %v685
          %v1051 = vunpack.c.l.b16 %v686
          %v1052 = vunpack.c.h.b16 %v686
          %v1053 = vunpack.c.l.b16 %v687
          %v1054 = vunpack.c.h.b16 %v687
          %v1055 = vunpack.c.l.b16 %v688
          %v1056 = vunpack.c.h.b16 %v688
          %v1057 = vunpack.c.l.b16 %v689
          %v1058 = vunpack.c.h.b16 %v689
          %v1059 = vunpack.c.l.b16 %v690
          %v1060 = vunpack.c.h.b16 %v690
          %v1061 = vunpack.c.l.b16 %v691
          %v1062 = vunpack.c.h.b16 %v691
          %v1063 = vunpack.c.l.b16 %v692
          %v1064 = vunpack.c.h.b16 %v692
          %v1065 = vunpack.c.l.b16 %v693
          %v1066 = vunpack.c.h.b16 %v693
          %v1067 = vunpack.c.l.b16 %v694
          %v1068 = vunpack.c.h.b16 %v694
          %v1069 = vunpack.c.l.b16 %v695
          %v1070 = vunpack.c.h.b16 %v695
          %v1071 = vunpack.c.l.b16 %v696
          %v1072 = vunpack.c.h.b16 %v696
          %v1073 = vunpack.c.l.b16 %v697
          %v1074 = vunpack.c.h.b16 %v697
          %v1075 = vunpack.c.l.b16 %v698
          %v1076 = vunpack.c.h.b16 %v698
          %v1077 = vunpack.c.l.b16 %v699
          %v1078 = vunpack.c.h.b16 %v699
          %v1079 = vunpack.c.l.b16 %v700
          %v1080 = vunpack.c.h.b16 %v700
          %v1081 = vunpack.c.l.b16 %v701
          %v1082 = vunpack.c.h.b16 %v701
          %v1083 = vunpack.c.l.b16 %v702
          %v1084 = vunpack.c.h.b16 %v702
          %v1085 = vunpack.c.l.b16 %v703
          %v1086 = vunpack.c.h.b16 %v703
          %v1087 = vunpack.c.l.b16 %v704
          %v1088 = vunpack.c.h.b16 %v704
          %v1089 = vunpack.c.l.b16 %v705
          %v1090 = vunpack.c.h.b16 %v705
          %v1091 = vunpack.c.l.b16 %v706
          %v1092 = vunpack.c.h.b16 %v706
          %v1093 = vunpack.c.l.b16 %v707
          %v1094 = vunpack.c.h.b16 %v707
          %v1095 = vunpack.c.l.b16 %v708
          %v1096 = vunpack.c.h.b16 %v708
          %v1097 = vunpack.c.l.b16 %v709
          %v1098 = vunpack.c.h.b16 %v709
          %v1099 = vunpack.c.l.b16 %v710
          %v1100 = vunpack.c.h.b16 %v710
          %v1101 = vunpack.c.l.b16 %v711
          %v1102 = vunpack.c.h.b16 %v711
          %v1103 = vunpack.c.l.b16 %v712
          %v1104 = vunpack.c.h.b16 %v712
          %v1105 = vunpack.c.l.b16 %v713
          %v1106 = vunpack.c.h.b16 %v713
          %v1107 = vunpack.c.l.b16 %v714
          %v1108 = vunpack.c.h.b16 %v714
          %v1109 = vunpack.c.l.b16 %v715
          %v1110 = vunpack.c.h.b16 %v715
          %v1111 = vunpack.c.l.b16 %v716
          %v1112 = vunpack.c.h.b16 %v716
          %v1113 = vunpack.c.l.b16 %v717
          %v1114 = vunpack.c.h.b16 %v717
          %v1115 = vunpack.c.l.b16 %v718
          %v1116 = vunpack.c.h.b16 %v718
          %v1117 = vunpack.c.l.b16 %v719
          %v1118 = vunpack.c.h.b16 %v719
          %v1119 = vunpack.c.l.b16 %v720
          %v1120 = vunpack.c.h.b16 %v720
          %v1121 = vunpack.c.l.b16 %v721
          %v1122 = vunpack.c.h.b16 %v721
          %v1123 = vunpack.c.l.b16 %v722
          %v1124 = vunpack.c.h.b16 %v722
          %v1125 = vunpack.c.l.b16 %v723
          %v1126 = vunpack.c.h.b16 %v723
          %v1127 = vunpack.c.l.b16 %v724
          %v1128 = vunpack.c.h.b16 %v724
          %v1129 = vunpack.c.l.b16 %v725
          %v1130 = vunpack.c.h.b16 %v725
          %v1131 = vunpack.c.l.b16 %v726
          %v1132 = vunpack.c.h.b16 %v726
          %v1133 = vpack.c.b16 %v881, %v877
          %v1134 = vpack.c.b16 %v882, %v878
          %v1135 = vpack.c.b16 %v883, %v879
          %v1136 = vpack.c.b16 %v884, %v880
          %v1137 = vpack.c.b16 %v889, %v885
          %v1138 = vpack.c.b16 %v890, %v886
          %v1139 = vpack.c.b16 %v891, %v887
          %v1140 = vpack.c.b16 %v892, %v888
          %v1141 = vpack.c.b16 %v897, %v893
          %v1142 = vpack.c.b16 %v898, %v894
          %v1143 = vpack.c.b16 %v899, %v895
          %v1144 = vpack.c.b16 %v900, %v896
          %v1145 = vpack.c.b16 %v905, %v901
          %v1146 = vpack.c.b16 %v906, %v902
          %v1147 = vpack.c.b16 %v907, %v903
          %v1148 = vpack.c.b16 %v908, %v904
          %v1149 = vpack.c.b16 %v913, %v909
          %v1150 = vpack.c.b16 %v914, %v910
          %v1151 = vpack.c.b16 %v915, %v911
          %v1152 = vpack.c.b16 %v916, %v912
          %v1153 = vpack.c.b16 %v921, %v917
          %v1154 = vpack.c.b16 %v922, %v918
          %v1155 = vpack.c.b16 %v923, %v919
          %v1156 = vpack.c.b16 %v924, %v920
          %v1157 = vpack.c.b16 %v929, %v925
          %v1158 = vpack.c.b16 %v930, %v926
          %v1159 = vpack.c.b16 %v931, %v927
          %v1160 = vpack.c.b16 %v932, %v928
          %v1161 = vpack.c.b16 %v937, %v933
          %v1162 = vpack.c.b16 %v938, %v934
          %v1163 = vpack.c.b16 %v939, %v935
          %v1164 = vpack.c.b16 %v940, %v936
          %v1165 = vpack.c.b16 %v945, %v941
          %v1166 = vpack.c.b16 %v946, %v942
          %v1167 = vpack.c.b16 %v947, %v943
          %v1168 = vpack.c.b16 %v948, %v944
          %v1169 = vpack.c.b16 %v953, %v949
          %v1170 = vpack.c.b16 %v954, %v950
          %v1171 = vpack.c.b16 %v955, %v951
          %v1172 = vpack.c.b16 %v956, %v952
          %v1173 = vpack.c.b16 %v961, %v957
          %v1174 = vpack.c.b16 %v962, %v958
          %v1175 = vpack.c.b16 %v963, %v959
          %v1176 = vpack.c.b16 %v964, %v960
          %v1177 = vpack.c.b16 %v969, %v965
          %v1178 = vpack.c.b16 %v970, %v966
          %v1179 = vpack.c.b16 %v971, %v967
          %v1180 = vpack.c.b16 %v972, %v968
          %v1181 = vpack.c.b16 %v977, %v973
          %v1182 = vpack.c.b16 %v978, %v974
          %v1183 = vpack.c.b16 %v979, %v975
          %v1184 = vpack.c.b16 %v980, %v976
          %v1185 = vpack.c.b16 %v985, %v981
          %v1186 = vpack.c.b16 %v986, %v982
          %v1187 = vpack.c.b16 %v987, %v983
          %v1188 = vpack.c.b16 %v988, %v984
          %v1189 = vpack.c.b16 %v993, %v989
          %v1190 = vpack.c.b16 %v994, %v990
          %v1191 = vpack.c.b16 %v995, %v991
          %v1192 = vpack.c.b16 %v996, %v992
          %v1193 = vpack.c.b16 %v1001, %v997
          %v1194 = vpack.c.b16 %v1002, %v998
          %v1195 = vpack.c.b16 %v1003, %v999
          %v1196 = vpack.c.b16 %v1004, %v1000
          %v1197 = vpack.c.b16 %v1009, %v1005
          %v1198 = vpack.c.b16 %v1010, %v1006
          %v1199 = vpack.c.b16 %v1011, %v1007
          %v1200 = vpack.c.b16 %v1012, %v1008
          %v1201 = vpack.c.b16 %v1017, %v1013
          %v1202 = vpack.c.b16 %v1018, %v1014
          %v1203 = vpack.c.b16 %v1019, %v1015
          %v1204 = vpack.c.b16 %v1020, %v1016
          %v1205 = vpack.c.b16 %v1025, %v1021
          %v1206 = vpack.c.b16 %v1026, %v1022
          %v1207 = vpack.c.b16 %v1027, %v1023
          %v1208 = vpack.c.b16 %v1028, %v1024
          %v1209 = vpack.c.b16 %v1033, %v1029
          %v1210 = vpack.c.b16 %v1034, %v1030
          %v1211 = vpack.c.b16 %v1035, %v1031
          %v1212 = vpack.c.b16 %v1036, %v1032
          %v1213 = vpack.c.b16 %v1041, %v1037
          %v1214 = vpack.c.b16 %v1042, %v1038
          %v1215 = vpack.c.b16 %v1043, %v1039
          %v1216 = vpack.c.b16 %v1044, %v1040
          %v1217 = vpack.c.b16 %v1049, %v1045
          %v1218 = vpack.c.b16 %v1050, %v1046
          %v1219 = vpack.c.b16 %v1051, %v1047
          %v1220 = vpack.c.b16 %v1052, %v1048
          %v1221 = vpack.c.b16 %v1057, %v1053
          %v1222 = vpack.c.b16 %v1058, %v1054
          %v1223 = vpack.c.b16 %v1059, %v1055
          %v1224 = vpack.c.b16 %v1060, %v1056
          %v1225 = vpack.c.b16 %v1065, %v1061
          %v1226 = vpack.c.b16 %v1066, %v1062
          %v1227 = vpack.c.b16 %v1067, %v1063
          %v1228 = vpack.c.b16 %v1068, %v1064
          %v1229 = vpack.c.b16 %v1073, %v1069
          %v1230 = vpack.c.b16 %v1074, %v1070
          %v1231 = vpack.c.b16 %v1075, %v1071
          %v1232 = vpack.c.b16 %v1076, %v1072
          %v1233 = vpack.c.b16 %v1081, %v1077
          %v1234 = vpack.c.b16 %v1082, %v1078
          %v1235 = vpack.c.b16 %v1083, %v1079
          %v1236 = vpack.c.b16 %v1084, %v1080
          %v1237 = vpack.c.b16 %v1089, %v1085
          %v1238 = vpack.c.b16 %v1090, %v1086
          %v1239 = vpack.c.b16 %v1091, %v1087
          %v1240 = vpack.c.b16 %v1092, %v1088
          %v1241 = vpack.c.b16 %v1097, %v1093
          %v1242 = vpack.c.b16 %v1098, %v1094
          %v1243 = vpack.c.b16 %v1099, %v1095
          %v1244 = vpack.c.b16 %v1100, %v1096
          %v1245 = vpack.c.b16 %v1105, %v1101
          %v1246 = vpack.c.b16 %v1106, %v1102
          %v1247 = vpack.c.b16 %v1107, %v1103
          %v1248 = vpack.c.b16 %v1108, %v1104
          %v1249 = vpack.c.b16 %v1113, %v1109
          %v1250 = vpack.c.b16 %v1114, %v1110
          %v1251 = vpack.c.b16 %v1115, %v1111
          %v1252 = vpack.c.b16 %v1116, %v1112
          %v1253 = vpack.c.b16 %v1121, %v1117
          %v1254 = vpack.c.b16 %v1122, %v1118
          %v1255 = vpack.c.b16 %v1123, %v1119
          %v1256 = vpack.c.b16 %v1124, %v1120
          %v1257 = vpack.c.b16 %v1129, %v1125
          %v1258 = vpack.c.b16 %v1130, %v1126
          %v1259 = vpack.c.b16 %v1131, %v1127
          %v1260 = vpack.c.b16 %v1132, %v1128
          %1389 = vmatprep.subr.bf16.mxu0 %v1134
          %1390 = vmatpush1.bf16.msra.mxu0 %v1133
          %1391 = vmatprep.subr.bf16.mxu0 %v1138
          %1392 = vmatpush1.bf16.msra.mxu0 %v1137
          %1393 = vmatprep.subr.bf16.mxu0 %v1142
          %1394 = vmatpush1.bf16.msra.mxu0 %v1141
          %1395 = vmatprep.subr.bf16.mxu0 %v1146
          %1396 = vmatpush1.bf16.msra.mxu0 %v1145
          %1397 = vmatprep.subr.bf16.mxu0 %v1150
          %1398 = vmatpush1.bf16.msra.mxu0 %v1149
          %1399 = vmatprep.subr.bf16.mxu0 %v1154
          %1400 = vmatpush1.bf16.msra.mxu0 %v1153
          %1401 = vmatprep.subr.bf16.mxu0 %v1158
          %1402 = vmatpush1.bf16.msra.mxu0 %v1157
          %1403 = vmatprep.subr.bf16.mxu0 %v1162
          %1404 = vmatpush1.bf16.msra.mxu0 %v1161
          %1405 = vmatprep.subr.bf16.mxu0 %v1166
          %1406 = vmatpush1.bf16.msra.mxu0 %v1165
          %1407 = vmatprep.subr.bf16.mxu0 %v1170
          %1408 = vmatpush1.bf16.msra.mxu0 %v1169
          %1409 = vmatprep.subr.bf16.mxu0 %v1174
          %1410 = vmatpush1.bf16.msra.mxu0 %v1173
          %1411 = vmatprep.subr.bf16.mxu0 %v1178
          %1412 = vmatpush1.bf16.msra.mxu0 %v1177
          %1413 = vmatprep.subr.bf16.mxu0 %v1182
          %1414 = vmatpush1.bf16.msra.mxu0 %v1181
          %1415 = vmatprep.subr.bf16.mxu0 %v1186
          %1416 = vmatpush1.bf16.msra.mxu0 %v1185
          %1417 = vmatprep.subr.bf16.mxu0 %v1190
          %1418 = vmatpush1.bf16.msra.mxu0 %v1189
          %1419 = vmatprep.subr.bf16.mxu0 %v1194
          %1420 = vmatpush1.bf16.msra.mxu0 %v1193
          %1421 = vmatprep.mubr.bf16.mxu0 %v596
          %1422 = vmatmul.mubr.bf16.gmra.mrb[0].mxu0 %v595
          %v1423 = vpop.f32.mrb[0].mxu0
          %v1424 = vadd.f32 %v732, %v1423
          %v1425 = vpop.f32.mrb[0].mxu0
          %v1426 = vadd.f32 %v736, %v1425
          %v1427 = vpop.f32.mrb[0].mxu0
          %v1428 = vadd.f32 %v732, %v1427
          %v1429 = vpop.f32.mrb[0].mxu0
          %v1430 = vadd.f32 %v736, %v1429
          %1431 = vdwg.mxu0
          %1432 = vmatprep.subr.bf16.mxu0 %v1198
          %1433 = vmatpush1.bf16.msra.mxu0 %v1197
          %1434 = vmatprep.subr.bf16.mxu0 %v1202
          %1435 = vmatpush1.bf16.msra.mxu0 %v1201
          %1436 = vmatprep.subr.bf16.mxu0 %v1206
          %1437 = vmatpush1.bf16.msra.mxu0 %v1205
          %1438 = vmatprep.subr.bf16.mxu0 %v1210
          %1439 = vmatpush1.bf16.msra.mxu0 %v1209
          %1440 = vmatprep.subr.bf16.mxu0 %v1214
          %1441 = vmatpush1.bf16.msra.mxu0 %v1213
          %1442 = vmatprep.subr.bf16.mxu0 %v1218
          %1443 = vmatpush1.bf16.msra.mxu0 %v1217
          %1444 = vmatprep.subr.bf16.mxu0 %v1222
          %1445 = vmatpush1.bf16.msra.mxu0 %v1221
          %1446 = vmatprep.subr.bf16.mxu0 %v1226
          %1447 = vmatpush1.bf16.msra.mxu0 %v1225
          %1448 = vmatprep.subr.bf16.mxu0 %v1230
          %1449 = vmatpush1.bf16.msra.mxu0 %v1229
          %1450 = vmatprep.subr.bf16.mxu0 %v1234
          %1451 = vmatpush1.bf16.msra.mxu0 %v1233
          %1452 = vmatprep.subr.bf16.mxu0 %v1238
          %1453 = vmatpush1.bf16.msra.mxu0 %v1237
          %1454 = vmatprep.subr.bf16.mxu0 %v1242
          %1455 = vmatpush1.bf16.msra.mxu0 %v1241
          %1456 = vmatprep.subr.bf16.mxu0 %v1246
          %1457 = vmatpush1.bf16.msra.mxu0 %v1245
          %1458 = vmatprep.subr.bf16.mxu0 %v1250
          %1459 = vmatpush1.bf16.msra.mxu0 %v1249
          %1460 = vmatprep.subr.bf16.mxu0 %v1254
          %1461 = vmatpush1.bf16.msra.mxu0 %v1253
          %1462 = vmatprep.subr.bf16.mxu0 %v1258
          %1463 = vmatpush1.bf16.msra.mxu0 %v1257
          %1464 = vmatprep.mubr.bf16.mxu0 %v598
          %1465 = vmatmul.mubr.bf16.gmra.mrb[0].mxu0 %v597
          %v1466 = vpop.f32.mrb[0].mxu0
          %v1467 = vadd.f32 %v1424, %v1466
          %v1468 = vpop.f32.mrb[0].mxu0
          %v1469 = vadd.f32 %v1426, %v1468
          %v1470 = vpop.f32.mrb[0].mxu0
          %v1471 = vadd.f32 %v1428, %v1470
          %v1472 = vpop.f32.mrb[0].mxu0
          %v1473 = vadd.f32 %v1430, %v1472
          %1474 = vdwg.mxu0
          %1475 = vmatprep.subr.bf16.mxu0 %v1136
          %1476 = vmatpush1.bf16.msra.mxu0 %v1135
          %1477 = vmatprep.subr.bf16.mxu0 %v1140
          %1478 = vmatpush1.bf16.msra.mxu0 %v1139
          %1479 = vmatprep.subr.bf16.mxu0 %v1144
          %1480 = vmatpush1.bf16.msra.mxu0 %v1143
          %1481 = vmatprep.subr.bf16.mxu0 %v1148
          %1482 = vmatpush1.bf16.msra.mxu0 %v1147
          %1483 = vmatprep.subr.bf16.mxu0 %v1152
          %1484 = vmatpush1.bf16.msra.mxu0 %v1151
          %1485 = vmatprep.subr.bf16.mxu0 %v1156
          %1486 = vmatpush1.bf16.msra.mxu0 %v1155
          %1487 = vmatprep.subr.bf16.mxu0 %v1160
          %1488 = vmatpush1.bf16.msra.mxu0 %v1159
          %1489 = vmatprep.subr.bf16.mxu0 %v1164
          %1490 = vmatpush1.bf16.msra.mxu0 %v1163
          %1491 = vmatprep.subr.bf16.mxu0 %v1168
          %1492 = vmatpush1.bf16.msra.mxu0 %v1167
          %1493 = vmatprep.subr.bf16.mxu0 %v1172
          %1494 = vmatpush1.bf16.msra.mxu0 %v1171
          %1495 = vmatprep.subr.bf16.mxu0 %v1176
          %1496 = vmatpush1.bf16.msra.mxu0 %v1175
          %1497 = vmatprep.subr.bf16.mxu0 %v1180
          %1498 = vmatpush1.bf16.msra.mxu0 %v1179
          %1499 = vmatprep.subr.bf16.mxu0 %v1184
          %1500 = vmatpush1.bf16.msra.mxu0 %v1183
          %1501 = vmatprep.subr.bf16.mxu0 %v1188
          %1502 = vmatpush1.bf16.msra.mxu0 %v1187
          %1503 = vmatprep.subr.bf16.mxu0 %v1192
          %1504 = vmatpush1.bf16.msra.mxu0 %v1191
          %1505 = vmatprep.subr.bf16.mxu0 %v1196
          %1506 = vmatpush1.bf16.msra.mxu0 %v1195
          %1507 = vmatprep.mubr.bf16.mxu0 %v596
          %1508 = vmatmul.mubr.bf16.gmra.mrb[0].mxu0 %v595
          %v1509 = vpop.f32.mrb[0].mxu0
          %v1510 = vadd.f32 %v740, %v1509
          %v1511 = vpop.f32.mrb[0].mxu0
          %v1512 = vadd.f32 %v744, %v1511
          %v1513 = vpop.f32.mrb[0].mxu0
          %v1514 = vadd.f32 %v740, %v1513
          %v1515 = vpop.f32.mrb[0].mxu0
          %v1516 = vadd.f32 %v744, %v1515
          %1517 = vdwg.mxu0
          %1518 = vmatprep.subr.bf16.mxu0 %v1200
          %1519 = vmatpush1.bf16.msra.mxu0 %v1199
          %1520 = vmatprep.subr.bf16.mxu0 %v1204
          %1521 = vmatpush1.bf16.msra.mxu0 %v1203
          %1522 = vmatprep.subr.bf16.mxu0 %v1208
          %1523 = vmatpush1.bf16.msra.mxu0 %v1207
          %1524 = vmatprep.subr.bf16.mxu0 %v1212
          %1525 = vmatpush1.bf16.msra.mxu0 %v1211
          %1526 = vmatprep.subr.bf16.mxu0 %v1216
          %1527 = vmatpush1.bf16.msra.mxu0 %v1215
          %1528 = vmatprep.subr.bf16.mxu0 %v1220
          %1529 = vmatpush1.bf16.msra.mxu0 %v1219
          %1530 = vmatprep.subr.bf16.mxu0 %v1224
          %1531 = vmatpush1.bf16.msra.mxu0 %v1223
          %1532 = vmatprep.subr.bf16.mxu0 %v1228
          %1533 = vmatpush1.bf16.msra.mxu0 %v1227
          %1534 = vmatprep.subr.bf16.mxu0 %v1232
          %1535 = vmatpush1.bf16.msra.mxu0 %v1231
          %1536 = vmatprep.subr.bf16.mxu0 %v1236
          %1537 = vmatpush1.bf16.msra.mxu0 %v1235
          %1538 = vmatprep.subr.bf16.mxu0 %v1240
          %1539 = vmatpush1.bf16.msra.mxu0 %v1239
          %1540 = vmatprep.subr.bf16.mxu0 %v1244
          %1541 = vmatpush1.bf16.msra.mxu0 %v1243
          %1542 = vmatprep.subr.bf16.mxu0 %v1248
          %1543 = vmatpush1.bf16.msra.mxu0 %v1247
          %1544 = vmatprep.subr.bf16.mxu0 %v1252
          %1545 = vmatpush1.bf16.msra.mxu0 %v1251
          %1546 = vmatprep.subr.bf16.mxu0 %v1256
          %1547 = vmatpush1.bf16.msra.mxu0 %v1255
          %1548 = vmatprep.subr.bf16.mxu0 %v1260
          %1549 = vmatpush1.bf16.msra.mxu0 %v1259
          %1550 = vmatprep.mubr.bf16.mxu0 %v598
          %1551 = vmatmul.mubr.bf16.gmra.mrb[0].mxu0 %v597
          %v1552 = vpop.f32.mrb[0].mxu0
          %v1553 = vadd.f32 %v1510, %v1552
          %v1554 = vpop.f32.mrb[0].mxu0
          %v1555 = vadd.f32 %v1512, %v1554
          %v1556 = vpop.f32.mrb[0].mxu0
          %v1557 = vadd.f32 %v1514, %v1556
          %v1558 = vpop.f32.mrb[0].mxu0
          %v1559 = vadd.f32 %v1516, %v1558
          %1560 = vdwg.mxu0
          %v1561 = vlaneseq
          %v1562 = vshrl.u32 %v1561, 7
          %v1563 = vadd.s32 %v1562, 8
          %vm1564 = vcmp.lt.s32.totalorder %v1562, 4
          %vm1565 = vcmp.lt.s32.totalorder %v1563, 4
          %v1566 = vsel %vm1564, 1, 0
          %v1567 = vsel %vm1565, 1, 0
          %v1568 = vcvt.s32.f32 %v1566
          %v1569 = vcvt.s32.f32 %v1567
          %v1570 = vmul.f32 %v1467, %v1568
          %v1571 = vmul.f32 %v1469, %v1568
          %v1572 = vmul.f32 %v1553, %v1568
          %v1573 = vmul.f32 %v1555, %v1568
          %v1574 = vmul.f32 %v1471, %v1569
          %v1575 = vmul.f32 %v1473, %v1569
          %v1576 = vmul.f32 %v1557, %v1569
          %v1577 = vmul.f32 %v1559, %v1569
          %v1578 = vadd.f32 %v1570, %v1574
          %v1579 = vrot.slane %v1578, 4
          %v1580 = vadd.f32 %v1578, %v1579
          %v1581 = vrot.slane %v1580, 2
          %v1582 = vadd.f32 %v1580, %v1581
          %v1583 = vrot.slane %v1582, 1
          %v1584 = vadd.f32 %v1582, %v1583
          %v1585 = vadd.f32 %v1571, %v1575
          %v1586 = vrot.slane %v1585, 4
          %v1587 = vadd.f32 %v1585, %v1586
          %v1588 = vrot.slane %v1587, 2
          %v1589 = vadd.f32 %v1587, %v1588
          %v1590 = vrot.slane %v1589, 1
          %v1591 = vadd.f32 %v1589, %v1590
          %v1592 = vadd.f32 %v1572, %v1576
          %v1593 = vrot.slane %v1592, 4
          %v1594 = vadd.f32 %v1592, %v1593
          %v1595 = vrot.slane %v1594, 2
          %v1596 = vadd.f32 %v1594, %v1595
          %v1597 = vrot.slane %v1596, 1
          %v1598 = vadd.f32 %v1596, %v1597
          %v1599 = vadd.f32 %v1573, %v1577
          %v1600 = vrot.slane %v1599, 4
          %v1601 = vadd.f32 %v1599, %v1600
          %v1602 = vrot.slane %v1601, 2
          %v1603 = vadd.f32 %v1601, %v1602
          %v1604 = vrot.slane %v1603, 1
          %v1605 = vadd.f32 %v1603, %v1604
          %v1606 = vmul.f32 %v1584, 0.25
          %v1607 = vmul.f32 %v1591, 0.25
          %v1608 = vmul.f32 %v1598, 0.25
          %v1609 = vmul.f32 %v1605, 0.25
          %v1610 = vmul.f32 %v1570, %v1467
          %v1611 = vmul.f32 %v1571, %v1469
          %v1612 = vmul.f32 %v1572, %v1553
          %v1613 = vmul.f32 %v1573, %v1555
          %v1614 = vmul.f32 %v1574, %v1471
          %v1615 = vmul.f32 %v1575, %v1473
          %v1616 = vmul.f32 %v1576, %v1557
          %v1617 = vmul.f32 %v1577, %v1559
          %v1618 = vadd.f32 %v1610, %v1614
          %v1619 = vrot.slane %v1618, 4
          %v1620 = vadd.f32 %v1618, %v1619
          %v1621 = vrot.slane %v1620, 2
          %v1622 = vadd.f32 %v1620, %v1621
          %v1623 = vrot.slane %v1622, 1
          %v1624 = vadd.f32 %v1622, %v1623
          %v1625 = vadd.f32 %v1611, %v1615
          %v1626 = vrot.slane %v1625, 4
          %v1627 = vadd.f32 %v1625, %v1626
          %v1628 = vrot.slane %v1627, 2
          %v1629 = vadd.f32 %v1627, %v1628
          %v1630 = vrot.slane %v1629, 1
          %v1631 = vadd.f32 %v1629, %v1630
          %v1632 = vadd.f32 %v1612, %v1616
          %v1633 = vrot.slane %v1632, 4
          %v1634 = vadd.f32 %v1632, %v1633
          %v1635 = vrot.slane %v1634, 2
          %v1636 = vadd.f32 %v1634, %v1635
          %v1637 = vrot.slane %v1636, 1
          %v1638 = vadd.f32 %v1636, %v1637
          %v1639 = vadd.f32 %v1613, %v1617
          %v1640 = vrot.slane %v1639, 4
          %v1641 = vadd.f32 %v1639, %v1640
          %v1642 = vrot.slane %v1641, 2
          %v1643 = vadd.f32 %v1641, %v1642
          %v1644 = vrot.slane %v1643, 1
          %v1645 = vadd.f32 %v1643, %v1644
          %v1646 = vmul.f32 %v1624, 0.25
          %v1647 = vmul.f32 %v1631, 0.25
          %v1648 = vmul.f32 %v1638, 0.25
          %v1649 = vmul.f32 %v1645, 0.25
          %v1650 = vmul.f32 %v1606, %v1606
          %v1651 = vmul.f32 %v1607, %v1607
          %v1652 = vmul.f32 %v1608, %v1608
          %v1653 = vmul.f32 %v1609, %v1609
          %v1654 = vsub.f32 %v1646, %v1650
          %v1655 = vsub.f32 %v1647, %v1651
          %v1656 = vsub.f32 %v1648, %v1652
          %v1657 = vsub.f32 %v1649, %v1653
          %v1658 = vld [vmem:[%s5] sm:$0xf]
          %v1659 = vadd.f32 %v1654, 1e-05
          %v1660 = vadd.f32 %v1655, 1e-05
          %v1661 = vadd.f32 %v1656, 1e-05
          %v1662 = vadd.f32 %v1657, 1e-05
          %v1663 = vrsqrt.pop %v1659
          %v1664 = vrsqrt.pop %v1660
          %v1665 = vrsqrt.pop %v1661
          %v1666 = vrsqrt.pop %v1662
          %v1671 = vcombine.low %v1663, %v1664
          %v1672 = vcombine.low %v1665, %v1666
          %v1674 = vunpack.c.l.s4 1966171168
          %v1675 = vunpack.c.0.s8 %v1674
          %v1676 = vlaneseq
          %v1677 = vshrl.u32 %v1676, 7
          %v1678 = vsub.s32 %v1675, %v1677
          %v1679 = vrot.slane %v1671, %v1678
          %v1681 = vunpack.c.l.s4 1966171168
          %v1682 = vunpack.c.0.s8 %v1681
          %v1683 = vlaneseq
          %v1684 = vshrl.u32 %v1683, 7
          %v1685 = vsub.s32 %v1682, %v1684
          %v1686 = vrot.slane %v1672, %v1685
          %v1687 = vcombine.low %v1679, %v1686
          %v1689 = vunpack.c.l.s4 1966171168
          %v1690 = vunpack.c.0.s8 %v1689
          %v1691 = vlaneseq
          %v1692 = vshrl.u32 %v1691, 7
          %v1693 = vsub.s32 %v1690, %v1692
          %v1694 = vrot.slane %v1687, %v1693
          %v1696 = vmul.f32 %v1658, %v1694
          %v1697 = vld [vmem:[%s6] sm:$0xf]
          %v1699 = vlaneseq
          %v1700 = vshrl.u32 %v1699, 7
          %v1701 = vsub.s32 0, %v1700
          %v1702 = vrot.slane %v1696, %v1701
          %v1703 = vlaneseq
          %v1704 = vshrl.u32 %v1703, 7
          %v1705 = vsub.s32 1, %v1704
          %v1706 = vrot.slane %v1696, %v1705
          %v1707 = vlaneseq
          %v1708 = vshrl.u32 %v1707, 7
          %v1709 = vsub.s32 2, %v1708
          %v1710 = vrot.slane %v1696, %v1709
          %v1711 = vlaneseq
          %v1712 = vshrl.u32 %v1711, 7
          %v1713 = vsub.s32 3, %v1712
          %v1714 = vrot.slane %v1696, %v1713
          %v1719 = vmul.f32 %v1606, %v1702
          %v1720 = vmul.f32 %v1607, %v1706
          %v1721 = vmul.f32 %v1608, %v1710
          %v1722 = vmul.f32 %v1609, %v1714
          %v1727 = vcombine.low %v1719, %v1720
          %v1728 = vcombine.low %v1721, %v1722
          %v1730 = vunpack.c.l.s4 1966171168
          %v1731 = vunpack.c.0.s8 %v1730
          %v1732 = vlaneseq
          %v1733 = vshrl.u32 %v1732, 7
          %v1734 = vsub.s32 %v1731, %v1733
          %v1735 = vrot.slane %v1727, %v1734
          %v1737 = vunpack.c.l.s4 1966171168
          %v1738 = vunpack.c.0.s8 %v1737
          %v1739 = vlaneseq
          %v1740 = vshrl.u32 %v1739, 7
          %v1741 = vsub.s32 %v1738, %v1740
          %v1742 = vrot.slane %v1728, %v1741
          %v1743 = vcombine.low %v1735, %v1742
          %v1745 = vunpack.c.l.s4 1966171168
          %v1746 = vunpack.c.0.s8 %v1745
          %v1747 = vlaneseq
          %v1748 = vshrl.u32 %v1747, 7
          %v1749 = vsub.s32 %v1746, %v1748
          %v1750 = vrot.slane %v1743, %v1749
          %v1752 = vsub.f32 %v1697, %v1750
          %v1753 = vmul.f32 %v1467, %v1702
          %v1754 = vmul.f32 %v1469, %v1706
          %v1755 = vmul.f32 %v1553, %v1710
          %v1756 = vmul.f32 %v1555, %v1714
          %v1757 = vmul.f32 %v1471, %v1702
          %v1758 = vmul.f32 %v1473, %v1706
          %v1759 = vmul.f32 %v1557, %v1710
          %v1760 = vmul.f32 %v1559, %v1714
          %v1762 = vlaneseq
          %v1763 = vshrl.u32 %v1762, 7
          %v1764 = vsub.s32 0, %v1763
          %v1765 = vrot.slane %v1752, %v1764
          %v1766 = vlaneseq
          %v1767 = vshrl.u32 %v1766, 7
          %v1768 = vsub.s32 1, %v1767
          %v1769 = vrot.slane %v1752, %v1768
          %v1770 = vlaneseq
          %v1771 = vshrl.u32 %v1770, 7
          %v1772 = vsub.s32 2, %v1771
          %v1773 = vrot.slane %v1752, %v1772
          %v1774 = vlaneseq
          %v1775 = vshrl.u32 %v1774, 7
          %v1776 = vsub.s32 3, %v1775
          %v1777 = vrot.slane %v1752, %v1776
          %v1782 = vadd.f32 %v1753, %v1765
          %v1783 = vadd.f32 %v1754, %v1769
          %v1784 = vadd.f32 %v1755, %v1773
          %v1785 = vadd.f32 %v1756, %v1777
          %v1786 = vadd.f32 %v1757, %v1765
          %v1787 = vadd.f32 %v1758, %v1769
          %v1788 = vadd.f32 %v1759, %v1773
          %v1789 = vadd.f32 %v1760, %v1777
          %v1790 = vmul.f32 %v1782, 0.2
          %v1791 = vmul.f32 %v1783, 0.2
          %v1792 = vmul.f32 %v1784, 0.2
          %v1793 = vmul.f32 %v1785, 0.2
          %v1794 = vmul.f32 %v1786, 0.2
          %v1795 = vmul.f32 %v1787, 0.2
          %v1796 = vmul.f32 %v1788, 0.2
          %v1797 = vmul.f32 %v1789, 0.2
          %v1798 = vmax.f32 %v1782, %v1790
          %v1799 = vmax.f32 %v1783, %v1791
          %v1800 = vmax.f32 %v1784, %v1792
          %v1801 = vmax.f32 %v1785, %v1793
          %v1802 = vmax.f32 %v1786, %v1794
          %v1803 = vmax.f32 %v1787, %v1795
          %v1804 = vmax.f32 %v1788, %v1796
          %v1805 = vmax.f32 %v1789, %v1797
          %v1806 = vpack.c.bf16 %v1802, %v1798
          %v1807 = vpack.c.bf16 %v1803, %v1799
          %v1808 = vpack.c.bf16 %v1804, %v1800
          %v1809 = vpack.c.bf16 %v1805, %v1801
          %1810 = vst [vmem:[#allocation2] sm:$0xff] %v1806
          %1811 = vst [vmem:[#allocation2 + $0x8] sm:$0xff] %v1807
          %1812 = vst [vmem:[#allocation2 + $0x10] sm:$0xff] %v1808
          %1813 = vst [vmem:[#allocation2 + $0x18] sm:$0xff] %v1809
        $region72: #{decoder_forward.1} parent=55 // pred_fallthru
          _
        %v1814 = vld [vmem:[#allocation2] sm:$0xff]
        %v1815 = vld [vmem:[#allocation2 + $0x8] sm:$0xff]
        %v1816 = vld [vmem:[#allocation2 + $0x10] sm:$0xff]
        %v1817 = vld [vmem:[#allocation2 + $0x18] sm:$0xff]
        %v1818 = vld [vmem:[%s380] sm:$0xff]
        %v1819 = vld [vmem:[%s380 + $0x8] sm:$0xff]
        %v1820 = vld [vmem:[%s380 + $0x10] sm:$0xff]
        %v1821 = vld [vmem:[%s380 + $0x18] sm:$0xff]
        %v1822 = vld [vmem:[%s380 + $0x20] sm:$0xff]
        %v1823 = vld [vmem:[%s380 + $0x28] sm:$0xff]
        %v1824 = vld [vmem:[%s380 + $0x30] sm:$0xff]
        %v1825 = vld [vmem:[%s380 + $0x38] sm:$0xff]
        %v1826 = vld [vmem:[%s380 + $0x40] sm:$0xff]
        %v1827 = vld [vmem:[%s380 + $0x48] sm:$0xff]
        %v1828 = vld [vmem:[%s380 + $0x50] sm:$0xff]
        %v1829 = vld [vmem:[%s380 + $0x58] sm:$0xff]
        %v1830 = vld [vmem:[%s380 + $0x60] sm:$0xff]
        %v1831 = vld [vmem:[%s380 + $0x68] sm:$0xff]
        %v1832 = vld [vmem:[%s380 + $0x70] sm:$0xff]
        %v1833 = vld [vmem:[%s380 + $0x78] sm:$0xff]
        %v1834 = vld [vmem:[%s380 + $0x80] sm:$0xff]
        %v1835 = vld [vmem:[%s380 + $0x88] sm:$0xff]
        %v1836 = vld [vmem:[%s380 + $0x90] sm:$0xff]
        %v1837 = vld [vmem:[%s380 + $0x98] sm:$0xff]
        %v1838 = vld [vmem:[%s380 + $0xa0] sm:$0xff]
        %v1839 = vld [vmem:[%s380 + $0xa8] sm:$0xff]
        %v1840 = vld [vmem:[%s380 + $0xb0] sm:$0xff]
        %v1841 = vld [vmem:[%s380 + $0xb8] sm:$0xff]
        %v1842 = vld [vmem:[%s380 + $0xc0] sm:$0xff]
        %v1843 = vld [vmem:[%s380 + $0xc8] sm:$0xff]
        %v1844 = vld [vmem:[%s380 + $0xd0] sm:$0xff]
        %v1845 = vld [vmem:[%s380 + $0xd8] sm:$0xff]
        %v1846 = vld [vmem:[%s380 + $0xe0] sm:$0xff]
        %v1847 = vld [vmem:[%s380 + $0xe8] sm:$0xff]
        %v1848 = vld [vmem:[%s380 + $0xf0] sm:$0xff]
        %v1849 = vld [vmem:[%s380 + $0xf8] sm:$0xff]
        %v1850 = vld [vmem:[%s380 + $0x100] sm:$0xff]
        %v1851 = vld [vmem:[%s380 + $0x108] sm:$0xff]
        %v1852 = vld [vmem:[%s380 + $0x110] sm:$0xff]
        %v1853 = vld [vmem:[%s380 + $0x118] sm:$0xff]
        %v1854 = vld [vmem:[%s380 + $0x120] sm:$0xff]
        %v1855 = vld [vmem:[%s380 + $0x128] sm:$0xff]
        %v1856 = vld [vmem:[%s380 + $0x130] sm:$0xff]
        %v1857 = vld [vmem:[%s380 + $0x138] sm:$0xff]
        %v1858 = vld [vmem:[%s380 + $0x140] sm:$0xff]
        %v1859 = vld [vmem:[%s380 + $0x148] sm:$0xff]
        %v1860 = vld [vmem:[%s380 + $0x150] sm:$0xff]
        %v1861 = vld [vmem:[%s380 + $0x158] sm:$0xff]
        %v1862 = vld [vmem:[%s380 + $0x160] sm:$0xff]
        %v1863 = vld [vmem:[%s380 + $0x168] sm:$0xff]
        %v1864 = vld [vmem:[%s380 + $0x170] sm:$0xff]
        %v1865 = vld [vmem:[%s380 + $0x178] sm:$0xff]
        %v1866 = vld [vmem:[%s380 + $0x180] sm:$0xff]
        %v1867 = vld [vmem:[%s380 + $0x188] sm:$0xff]
        %v1868 = vld [vmem:[%s380 + $0x190] sm:$0xff]
        %v1869 = vld [vmem:[%s380 + $0x198] sm:$0xff]
        %v1870 = vld [vmem:[%s380 + $0x1a0] sm:$0xff]
        %v1871 = vld [vmem:[%s380 + $0x1a8] sm:$0xff]
        %v1872 = vld [vmem:[%s380 + $0x1b0] sm:$0xff]
        %v1873 = vld [vmem:[%s380 + $0x1b8] sm:$0xff]
        %v1874 = vld [vmem:[%s380 + $0x1c0] sm:$0xff]
        %v1875 = vld [vmem:[%s380 + $0x1c8] sm:$0xff]
        %v1876 = vld [vmem:[%s380 + $0x1d0] sm:$0xff]
        %v1877 = vld [vmem:[%s380 + $0x1d8] sm:$0xff]
        %v1878 = vld [vmem:[%s380 + $0x1e0] sm:$0xff]
        %v1879 = vld [vmem:[%s380 + $0x1e8] sm:$0xff]
        %v1880 = vld [vmem:[%s380 + $0x1f0] sm:$0xff]
        %v1881 = vld [vmem:[%s380 + $0x1f8] sm:$0xff]
        %v1882 = vld [vmem:[%s428] sm:$0x3]
        %v1884 = vlaneseq
        %v1885 = vshrl.u32 %v1884, 7
        %v1886 = vsub.s32 0, %v1885
        %v1887 = vrot.slane %v1882, %v1886
        %v1888 = vlaneseq
        %v1889 = vshrl.u32 %v1888, 7
        %v1890 = vsub.s32 1, %v1889
        %v1891 = vrot.slane %v1882, %v1890
        %v1958 = vunpack.c.l.b16 %v1818
        %v1959 = vunpack.c.h.b16 %v1818
        %v1960 = vunpack.c.l.b16 %v1819
        %v1961 = vunpack.c.h.b16 %v1819
        %v1962 = vunpack.c.l.b16 %v1820
        %v1963 = vunpack.c.h.b16 %v1820
        %v1964 = vunpack.c.l.b16 %v1821
        %v1965 = vunpack.c.h.b16 %v1821
        %v1966 = vunpack.c.l.b16 %v1822
        %v1967 = vunpack.c.h.b16 %v1822
        %v1968 = vunpack.c.l.b16 %v1823
        %v1969 = vunpack.c.h.b16 %v1823
        %v1970 = vunpack.c.l.b16 %v1824
        %v1971 = vunpack.c.h.b16 %v1824
        %v1972 = vunpack.c.l.b16 %v1825
        %v1973 = vunpack.c.h.b16 %v1825
        %v1974 = vunpack.c.l.b16 %v1826
        %v1975 = vunpack.c.h.b16 %v1826
        %v1976 = vunpack.c.l.b16 %v1827
        %v1977 = vunpack.c.h.b16 %v1827
        %v1978 = vunpack.c.l.b16 %v1828
        %v1979 = vunpack.c.h.b16 %v1828
        %v1980 = vunpack.c.l.b16 %v1829
        %v1981 = vunpack.c.h.b16 %v1829
        %v1982 = vunpack.c.l.b16 %v1830
        %v1983 = vunpack.c.h.b16 %v1830
        %v1984 = vunpack.c.l.b16 %v1831
        %v1985 = vunpack.c.h.b16 %v1831
        %v1986 = vunpack.c.l.b16 %v1832
        %v1987 = vunpack.c.h.b16 %v1832
        %v1988 = vunpack.c.l.b16 %v1833
        %v1989 = vunpack.c.h.b16 %v1833
        %v1990 = vunpack.c.l.b16 %v1834
        %v1991 = vunpack.c.h.b16 %v1834
        %v1992 = vunpack.c.l.b16 %v1835
        %v1993 = vunpack.c.h.b16 %v1835
        %v1994 = vunpack.c.l.b16 %v1836
        %v1995 = vunpack.c.h.b16 %v1836
        %v1996 = vunpack.c.l.b16 %v1837
        %v1997 = vunpack.c.h.b16 %v1837
        %v1998 = vunpack.c.l.b16 %v1838
        %v1999 = vunpack.c.h.b16 %v1838
        %v2000 = vunpack.c.l.b16 %v1839
        %v2001 = vunpack.c.h.b16 %v1839
        %v2002 = vunpack.c.l.b16 %v1840
        %v2003 = vunpack.c.h.b16 %v1840
        %v2004 = vunpack.c.l.b16 %v1841
        %v2005 = vunpack.c.h.b16 %v1841
        %v2006 = vunpack.c.l.b16 %v1842
        %v2007 = vunpack.c.h.b16 %v1842
        %v2008 = vunpack.c.l.b16 %v1843
        %v2009 = vunpack.c.h.b16 %v1843
        %v2010 = vunpack.c.l.b16 %v1844
        %v2011 = vunpack.c.h.b16 %v1844
        %v2012 = vunpack.c.l.b16 %v1845
        %v2013 = vunpack.c.h.b16 %v1845
        %v2014 = vunpack.c.l.b16 %v1846
        %v2015 = vunpack.c.h.b16 %v1846
        %v2016 = vunpack.c.l.b16 %v1847
        %v2017 = vunpack.c.h.b16 %v1847
        %v2018 = vunpack.c.l.b16 %v1848
        %v2019 = vunpack.c.h.b16 %v1848
        %v2020 = vunpack.c.l.b16 %v1849
        %v2021 = vunpack.c.h.b16 %v1849
        %v2022 = vunpack.c.l.b16 %v1850
        %v2023 = vunpack.c.h.b16 %v1850
        %v2024 = vunpack.c.l.b16 %v1851
        %v2025 = vunpack.c.h.b16 %v1851
        %v2026 = vunpack.c.l.b16 %v1852
        %v2027 = vunpack.c.h.b16 %v1852
        %v2028 = vunpack.c.l.b16 %v1853
        %v2029 = vunpack.c.h.b16 %v1853
        %v2030 = vunpack.c.l.b16 %v1854
        %v2031 = vunpack.c.h.b16 %v1854
        %v2032 = vunpack.c.l.b16 %v1855
        %v2033 = vunpack.c.h.b16 %v1855
        %v2034 = vunpack.c.l.b16 %v1856
        %v2035 = vunpack.c.h.b16 %v1856
        %v2036 = vunpack.c.l.b16 %v1857
        %v2037 = vunpack.c.h.b16 %v1857
        %v2038 = vunpack.c.l.b16 %v1858
        %v2039 = vunpack.c.h.b16 %v1858
        %v2040 = vunpack.c.l.b16 %v1859
        %v2041 = vunpack.c.h.b16 %v1859
        %v2042 = vunpack.c.l.b16 %v1860
        %v2043 = vunpack.c.h.b16 %v1860
        %v2044 = vunpack.c.l.b16 %v1861
        %v2045 = vunpack.c.h.b16 %v1861
        %v2046 = vunpack.c.l.b16 %v1862
        %v2047 = vunpack.c.h.b16 %v1862
        %v2048 = vunpack.c.l.b16 %v1863
        %v2049 = vunpack.c.h.b16 %v1863
        %v2050 = vunpack.c.l.b16 %v1864
        %v2051 = vunpack.c.h.b16 %v1864
        %v2052 = vunpack.c.l.b16 %v1865
        %v2053 = vunpack.c.h.b16 %v1865
        %v2054 = vunpack.c.l.b16 %v1866
        %v2055 = vunpack.c.h.b16 %v1866
        %v2056 = vunpack.c.l.b16 %v1867
        %v2057 = vunpack.c.h.b16 %v1867
        %v2058 = vunpack.c.l.b16 %v1868
        %v2059 = vunpack.c.h.b16 %v1868
        %v2060 = vunpack.c.l.b16 %v1869
        %v2061 = vunpack.c.h.b16 %v1869
        %v2062 = vunpack.c.l.b16 %v1870
        %v2063 = vunpack.c.h.b16 %v1870
        %v2064 = vunpack.c.l.b16 %v1871
        %v2065 = vunpack.c.h.b16 %v1871
        %v2066 = vunpack.c.l.b16 %v1872
        %v2067 = vunpack.c.h.b16 %v1872
        %v2068 = vunpack.c.l.b16 %v1873
        %v2069 = vunpack.c.h.b16 %v1873
        %v2070 = vunpack.c.l.b16 %v1874
        %v2071 = vunpack.c.h.b16 %v1874
        %v2072 = vunpack.c.l.b16 %v1875
        %v2073 = vunpack.c.h.b16 %v1875
        %v2074 = vunpack.c.l.b16 %v1876
        %v2075 = vunpack.c.h.b16 %v1876
        %v2076 = vunpack.c.l.b16 %v1877
        %v2077 = vunpack.c.h.b16 %v1877
        %v2078 = vunpack.c.l.b16 %v1878
        %v2079 = vunpack.c.h.b16 %v1878
        %v2080 = vunpack.c.l.b16 %v1879
        %v2081 = vunpack.c.h.b16 %v1879
        %v2082 = vunpack.c.l.b16 %v1880
        %v2083 = vunpack.c.h.b16 %v1880
        %v2084 = vunpack.c.l.b16 %v1881
        %v2085 = vunpack.c.h.b16 %v1881
        %v2086 = vpack.c.b16 %v1960, %v1958
        %v2087 = vpack.c.b16 %v1961, %v1959
        %v2088 = vpack.c.b16 %v1964, %v1962
        %v2089 = vpack.c.b16 %v1965, %v1963
        %v2090 = vpack.c.b16 %v1968, %v1966
        %v2091 = vpack.c.b16 %v1969, %v1967
        %v2092 = vpack.c.b16 %v1972, %v1970
        %v2093 = vpack.c.b16 %v1973, %v1971
        %v2094 = vpack.c.b16 %v1976, %v1974
        %v2095 = vpack.c.b16 %v1977, %v1975
        %v2096 = vpack.c.b16 %v1980, %v1978
        %v2097 = vpack.c.b16 %v1981, %v1979
        %v2098 = vpack.c.b16 %v1984, %v1982
        %v2099 = vpack.c.b16 %v1985, %v1983
        %v2100 = vpack.c.b16 %v1988, %v1986
        %v2101 = vpack.c.b16 %v1989, %v1987
        %v2102 = vpack.c.b16 %v1992, %v1990
        %v2103 = vpack.c.b16 %v1993, %v1991
        %v2104 = vpack.c.b16 %v1996, %v1994
        %v2105 = vpack.c.b16 %v1997, %v1995
        %v2106 = vpack.c.b16 %v2000, %v1998
        %v2107 = vpack.c.b16 %v2001, %v1999
        %v2108 = vpack.c.b16 %v2004, %v2002
        %v2109 = vpack.c.b16 %v2005, %v2003
        %v2110 = vpack.c.b16 %v2008, %v2006
        %v2111 = vpack.c.b16 %v2009, %v2007
        %v2112 = vpack.c.b16 %v2012, %v2010
        %v2113 = vpack.c.b16 %v2013, %v2011
        %v2114 = vpack.c.b16 %v2016, %v2014
        %v2115 = vpack.c.b16 %v2017, %v2015
        %v2116 = vpack.c.b16 %v2020, %v2018
        %v2117 = vpack.c.b16 %v2021, %v2019
        %v2118 = vpack.c.b16 %v2024, %v2022
        %v2119 = vpack.c.b16 %v2025, %v2023
        %v2120 = vpack.c.b16 %v2028, %v2026
        %v2121 = vpack.c.b16 %v2029, %v2027
        %v2122 = vpack.c.b16 %v2032, %v2030
        %v2123 = vpack.c.b16 %v2033, %v2031
        %v2124 = vpack.c.b16 %v2036, %v2034
        %v2125 = vpack.c.b16 %v2037, %v2035
        %v2126 = vpack.c.b16 %v2040, %v2038
        %v2127 = vpack.c.b16 %v2041, %v2039
        %v2128 = vpack.c.b16 %v2044, %v2042
        %v2129 = vpack.c.b16 %v2045, %v2043
        %v2130 = vpack.c.b16 %v2048, %v2046
        %v2131 = vpack.c.b16 %v2049, %v2047
        %v2132 = vpack.c.b16 %v2052, %v2050
        %v2133 = vpack.c.b16 %v2053, %v2051
        %v2134 = vpack.c.b16 %v2056, %v2054
        %v2135 = vpack.c.b16 %v2057, %v2055
        %v2136 = vpack.c.b16 %v2060, %v2058
        %v2137 = vpack.c.b16 %v2061, %v2059
        %v2138 = vpack.c.b16 %v2064, %v2062
        %v2139 = vpack.c.b16 %v2065, %v2063
        %v2140 = vpack.c.b16 %v2068, %v2066
        %v2141 = vpack.c.b16 %v2069, %v2067
        %v2142 = vpack.c.b16 %v2072, %v2070
        %v2143 = vpack.c.b16 %v2073, %v2071
        %v2144 = vpack.c.b16 %v2076, %v2074
        %v2145 = vpack.c.b16 %v2077, %v2075
        %v2146 = vpack.c.b16 %v2080, %v2078
        %v2147 = vpack.c.b16 %v2081, %v2079
        %v2148 = vpack.c.b16 %v2084, %v2082
        %v2149 = vpack.c.b16 %v2085, %v2083
        %2214 = vmatprep.subr.bf16.mxu0 %v2087
        %2215 = vmatpush1.bf16.msra.mxu0 %v2086
        %2216 = vmatprep.subr.bf16.mxu0 %v2089
        %2217 = vmatpush1.bf16.msra.mxu0 %v2088
        %2218 = vmatprep.subr.bf16.mxu0 %v2091
        %2219 = vmatpush1.bf16.msra.mxu0 %v2090
        %2220 = vmatprep.subr.bf16.mxu0 %v2093
        %2221 = vmatpush1.bf16.msra.mxu0 %v2092
        %2222 = vmatprep.subr.bf16.mxu0 %v2095
        %2223 = vmatpush1.bf16.msra.mxu0 %v2094
        %2224 = vmatprep.subr.bf16.mxu0 %v2097
        %2225 = vmatpush1.bf16.msra.mxu0 %v2096
        %2226 = vmatprep.subr.bf16.mxu0 %v2099
        %2227 = vmatpush1.bf16.msra.mxu0 %v2098
        %2228 = vmatprep.subr.bf16.mxu0 %v2101
        %2229 = vmatpush1.bf16.msra.mxu0 %v2100
        %2230 = vmatprep.subr.bf16.mxu0 %v2103
        %2231 = vmatpush1.bf16.msra.mxu0 %v2102
        %2232 = vmatprep.subr.bf16.mxu0 %v2105
        %2233 = vmatpush1.bf16.msra.mxu0 %v2104
        %2234 = vmatprep.subr.bf16.mxu0 %v2107
        %2235 = vmatpush1.bf16.msra.mxu0 %v2106
        %2236 = vmatprep.subr.bf16.mxu0 %v2109
        %2237 = vmatpush1.bf16.msra.mxu0 %v2108
        %2238 = vmatprep.subr.bf16.mxu0 %v2111
        %2239 = vmatpush1.bf16.msra.mxu0 %v2110
        %2240 = vmatprep.subr.bf16.mxu0 %v2113
        %2241 = vmatpush1.bf16.msra.mxu0 %v2112
        %2242 = vmatprep.subr.bf16.mxu0 %v2115
        %2243 = vmatpush1.bf16.msra.mxu0 %v2114
        %2244 = vmatprep.subr.bf16.mxu0 %v2117
        %2245 = vmatpush1.bf16.msra.mxu0 %v2116
        %2246 = vmatprep.mubr.bf16.mxu0 %v1815
        %2247 = vmatmul.mubr.bf16.gmra.mrb[0].mxu0 %v1814
        %v2248 = vpop.f32.mrb[0].mxu0
        %v2249 = vadd.f32 %v1887, %v2248
        %v2250 = vpop.f32.mrb[0].mxu0
        %v2251 = vadd.f32 %v1891, %v2250
        %v2252 = vpop.f32.mrb[0].mxu0
        %v2253 = vadd.f32 %v1887, %v2252
        %v2254 = vpop.f32.mrb[0].mxu0
        %v2255 = vadd.f32 %v1891, %v2254
        %2256 = vdwg.mxu0
        %2257 = vmatprep.subr.bf16.mxu0 %v2119
        %2258 = vmatpush1.bf16.msra.mxu0 %v2118
        %2259 = vmatprep.subr.bf16.mxu0 %v2121
        %2260 = vmatpush1.bf16.msra.mxu0 %v2120
        %2261 = vmatprep.subr.bf16.mxu0 %v2123
        %2262 = vmatpush1.bf16.msra.mxu0 %v2122
        %2263 = vmatprep.subr.bf16.mxu0 %v2125
        %2264 = vmatpush1.bf16.msra.mxu0 %v2124
        %2265 = vmatprep.subr.bf16.mxu0 %v2127
        %2266 = vmatpush1.bf16.msra.mxu0 %v2126
        %2267 = vmatprep.subr.bf16.mxu0 %v2129
        %2268 = vmatpush1.bf16.msra.mxu0 %v2128
        %2269 = vmatprep.subr.bf16.mxu0 %v2131
        %2270 = vmatpush1.bf16.msra.mxu0 %v2130
        %2271 = vmatprep.subr.bf16.mxu0 %v2133
        %2272 = vmatpush1.bf16.msra.mxu0 %v2132
        %2273 = vmatprep.subr.bf16.mxu0 %v2135
        %2274 = vmatpush1.bf16.msra.mxu0 %v2134
        %2275 = vmatprep.subr.bf16.mxu0 %v2137
        %2276 = vmatpush1.bf16.msra.mxu0 %v2136
        %2277 = vmatprep.subr.bf16.mxu0 %v2139
        %2278 = vmatpush1.bf16.msra.mxu0 %v2138
        %2279 = vmatprep.subr.bf16.mxu0 %v2141
        %2280 = vmatpush1.bf16.msra.mxu0 %v2140
        %2281 = vmatprep.subr.bf16.mxu0 %v2143
        %2282 = vmatpush1.bf16.msra.mxu0 %v2142
        %2283 = vmatprep.subr.bf16.mxu0 %v2145
        %2284 = vmatpush1.bf16.msra.mxu0 %v2144
        %2285 = vmatprep.subr.bf16.mxu0 %v2147
        %2286 = vmatpush1.bf16.msra.mxu0 %v2146
        %2287 = vmatprep.subr.bf16.mxu0 %v2149
        %2288 = vmatpush1.bf16.msra.mxu0 %v2148
        %2289 = vmatprep.mubr.bf16.mxu0 %v1817
        %2290 = vmatmul.mubr.bf16.gmra.mrb[0].mxu0 %v1816
        %v2291 = vpop.f32.mrb[0].mxu0
        %v2292 = vadd.f32 %v2249, %v2291
        %v2293 = vpop.f32.mrb[0].mxu0
        %v2294 = vadd.f32 %v2251, %v2293
        %v2295 = vpop.f32.mrb[0].mxu0
        %v2296 = vadd.f32 %v2253, %v2295
        %v2297 = vpop.f32.mrb[0].mxu0
        %v2298 = vadd.f32 %v2255, %v2297
        %2299 = vdwg.mxu0
        %v2300 = vtanh.pop %v2292
        %v2301 = vtanh.pop %v2294
        %v2302 = vtanh.pop %v2296
        %v2303 = vtanh.pop %v2298
        %2304 = vst [vmem:[%s419] sm:$0xff] %v2300
        %2305 = vst [vmem:[%s419 + $0x8] sm:$0xff] %v2301
        %2306 = vst [vmem:[%s419 + $0x10] sm:$0xff] %v2302
        %2307 = vst [vmem:[%s419 + $0x18] sm:$0xff] %v2303
        %s2308 = sand.u32 %s253, 1
        %s2309 = sand.u32 %s253, 1
        %s2310 = smul.addr %s2309, 32
        %s2311 = scalar_lea.vmem [#allocation8], %s2310
        // Predicated region
        $region73: #{decoder_forward.1} parent=55 // pred_check
          %p2312 = pneg %p263
        $region74: #{decoder_forward.1} parent=55 // pred_check_branch
          %2314 = sbr.rel (%p2312) target = $region76
        $region75: #{decoder_forward.1} parent=55 // pred_region
          %s2315 = smul.u32 %s26, 2
          %s2316 = sadd.s32 %s2315, %s27
          %s2317 = smul.u32 2, %s2316
          %s2318 = smul.addr %s2317, 8
          %s2319 = scalar_lea.vmem %s9, %s2318
          // Predicated region
          $region77: #{decoder_forward.1} parent=75 // pred_check
            _
          $region78: #{decoder_forward.1} parent=75 // pred_check_branch
            %2321 = sbr.rel (0) target = $region80
          $region79: #{decoder_forward.1} parent=75 // pred_region
            // Predicated region
            $region81: #{decoder_forward.1} parent=79 // pred_check
              _
            $region82: #{decoder_forward.1} parent=79 // pred_check_branch
              %2323 = sbr.rel (0) target = $region84
            $region83: #{decoder_forward.1} parent=79 // pred_region
              loop: start=0, step=1, limit=1
              $region85: #{decoder_forward.1} parent=83 // loop_pre_header
                _
              $region86: #{decoder_forward.1} parent=83 // loop_header
                %s2325 = sphi 0, %s2329
                %p2326 = scmp.ge.s32.totalorder %s2325, 1
                %s2330 = sphi %s2311, %s2311
                %s2331 = sphi %s2319, %s2319
              $region87: #{decoder_forward.1} parent=83 // loop_header_branch
                %2328 = sbr.rel (%p2326) target = $region91
              $region88: #{decoder_forward.1} parent=83 // loop_body
                %v2332 = vld [vmem:[%s2330] sm:$0xff]
                %2333 = vst [vmem:[%s2331] sm:$0xff] %v2332
                %v2334 = vld [vmem:[%s2330 + $0x8] sm:$0xff]
                %2335 = vst [vmem:[%s2331 + $0x8] sm:$0xff] %v2334
                %v2336 = vld [vmem:[%s2330 + $0x10] sm:$0xff]
                %2337 = vst [vmem:[%s2331 + $0x40] sm:$0xff] %v2336
                %v2338 = vld [vmem:[%s2330 + $0x18] sm:$0xff]
                %2339 = vst [vmem:[%s2331 + $0x48] sm:$0xff] %v2338
              $region89: #{decoder_forward.1} parent=83 // loop_footer
                %s2329 = sadd.s32 1, %s2325
              $region90: #{decoder_forward.1} parent=83 // loop_footer_branch
                %2324 = sbr.rel target = $region86
              $region91: #{decoder_forward.1} parent=83 // loop_exit
                _
            $region84: #{decoder_forward.1} parent=79 // pred_fallthru
              _
            // Predicated region
            $region92: #{decoder_forward.1} parent=79 // pred_check
              _
            $region93: #{decoder_forward.1} parent=79 // pred_check_branch
              %2341 = sbr.rel target = $region95
            $region94: #{decoder_forward.1} parent=79 // pred_region
              _
            $region95: #{decoder_forward.1} parent=79 // pred_fallthru
              _
          $region80: #{decoder_forward.1} parent=75 // pred_fallthru
            _
          %2342 = vnop
        $region76: #{decoder_forward.1} parent=55 // pred_fallthru
          _
      $region56: #{decoder_forward.1} parent=5 // pred_fallthru
        _
      %p2343 = scmp.le.s32.totalorder 2, %s17
      // Predicated region
      $region96: #{decoder_forward.1} parent=5 // pred_check
        %p2344 = pneg %p2343
      $region97: #{decoder_forward.1} parent=5 // pred_check_branch
        %2346 = sbr.rel (%p2344) target = $region99
      $region98: #{decoder_forward.1} parent=5 // pred_region
        %s2347 = ssub.s32 %s17, 2
        // Predicated region
        $region100: #{decoder_forward.1} parent=98 // pred_check
          %p2348 = pneg %p269
        $region101: #{decoder_forward.1} parent=98 // pred_check_branch
          %2350 = sbr.rel (%p2348) target = $region103
        $region102: #{decoder_forward.1} parent=98 // pred_region
          %s2351 = sand.u32 %s254, 1
          %s2352 = sand.u32 %s254, 1
          %s2353 = smul.addr %s2352, 32
          %s2354 = scalar_lea.vmem [#allocation8], %s2353
        $region103: #{decoder_forward.1} parent=98 // pred_fallthru
          _
      $region99: #{decoder_forward.1} parent=5 // pred_fallthru
        _
    $region6: #{decoder_forward.1} parent=1 // loop_footer
      %s21 = sadd.s32 1, %s17
    $region7: #{decoder_forward.1} parent=1 // loop_footer_branch
      %16 = sbr.rel target = $region3
    $region8: #{decoder_forward.1} parent=1 // loop_exit
      _
    %2355 = vsyncpa [#allocation4], 1
    %s2356 = scalar_lea.sflag [#allocation4], 1
    %2357 = vsyncpa %s2356, 1
    %2358 = vsyncpa [#allocation6], 1

</llo_original>
